<compile_context>
chip_gen: v5e
topology: v5e:2x2
jax: 0.10.0
libtpu: 0.0.40
codegen_flags: <defaults>
</compile_context>

<pallas_src>
import functools
import math

import jax
import jax.numpy as jnp
from jax.experimental import pallas as pl
from jax.experimental.pallas import tpu as pltpu


# ----------------------------- fused decoder-layer kernel ------------------------

def _layer_norm(z, g, b):
    # LayerNorm over last dim, eps = 1e-5 (PyTorch default, biased variance).
    mean = jnp.mean(z, axis=-1, keepdims=True)
    var = jnp.mean(jnp.square(z - mean), axis=-1, keepdims=True)
    return (z - mean) * jax.lax.rsqrt(var + 1e-5) * g + b


def _decoder_layer_kernel(
    x_ref, enc_ref, tbias_ref, sbias_ref,
    sa_wqkv_ref, sa_bqkv_ref, sa_wo_ref, sa_bo_ref,
    ea_wq_ref, ea_bq_ref, ea_wkv_ref, ea_bkv_ref, ea_wo_ref, ea_bo_ref,
    ln1_g_ref, ln1_b_ref, ln2_g_ref, ln2_b_ref, ln3_g_ref, ln3_b_ref,
    w1_ref, b1_ref, w2_ref, b2_ref,
    outw_ref, outb_ref,
    o_ref,
    x_sc,
    *, num_heads, d_k,
):
    D = num_heads * d_k
    scale = 1.0 / math.sqrt(d_k)
    layer = pl.program_id(1)

    # Load the (per-batch) activation into the carried scratch on the first layer.
    @pl.when(layer == 0)
    def _():
        x_sc[...] = x_ref[...]

    x = x_sc[...]          # (Lt, D)  f32
    enc = enc_ref[...]     # (Ls, D)  f32
    tbias = tbias_ref[...]  # (Lt, Lt) additive mask bias (0 / -1e30)
    sbias = sbias_ref[...]  # (Lt, Ls)

    def mm(a, w, b=None):
        # bf16 operands on the MXU, f32 accumulation.
        out = jnp.dot(a.astype(jnp.bfloat16), w, preferred_element_type=jnp.float32)
        return out if b is None else out + b

    def split_heads(t):  # (M, H*d_k) f32 -> (H, M, d_k) bf16
        return jnp.stack(
            [t[:, h * d_k:(h + 1) * d_k] for h in range(num_heads)], axis=0
        ).astype(jnp.bfloat16)

    def attend(q, k, v, wo, bo, bias):
        # One batched einsum over heads for scores and ctx, one fused Wo matmul.
        qh, kh, vh = split_heads(q), split_heads(k), split_heads(v)
        s = jnp.einsum('hmd,hnd->hmn', qh, kh,
                       preferred_element_type=jnp.float32)          # (H, M, N)
        s = s * scale + bias[None, :, :]
        s = s - jnp.max(s, axis=-1, keepdims=True)
        p = jnp.exp(s)
        p = p * pl.reciprocal(jnp.sum(p, axis=-1, keepdims=True), approx=True)
        ctx = jnp.einsum('hmn,hnd->hmd', p.astype(jnp.bfloat16), vh,
                         preferred_element_type=jnp.float32)         # (H, M, d_k)
        ctx_all = jnp.concatenate(
            [ctx[h] for h in range(num_heads)], axis=-1)             # (M, D) lane-concat
        return mm(ctx_all, wo, bo)                                   # single D-contraction

    # --- self attention (fused QKV) + residual + LayerNorm -----------------------
    qkv = mm(x, sa_wqkv_ref[...], sa_bqkv_ref[...])                  # (Lt, 3D)
    sa = attend(qkv[:, 0:D], qkv[:, D:2 * D], qkv[:, 2 * D:3 * D],
                sa_wo_ref[...], sa_bo_ref[...], tbias)
    x = _layer_norm(x + sa, ln1_g_ref[...], ln1_b_ref[...])

    # --- encoder-decoder attention (fused KV) + residual + LayerNorm -------------
    q = mm(x, ea_wq_ref[...], ea_bq_ref[...])                        # (Lt, D)
    kv = mm(enc, ea_wkv_ref[...], ea_bkv_ref[...])                   # (Ls, 2D)
    ea = attend(q, kv[:, 0:D], kv[:, D:2 * D],
                ea_wo_ref[...], ea_bo_ref[...], sbias)
    x = _layer_norm(x + ea, ln2_g_ref[...], ln2_b_ref[...])

    # --- position-wise FFN + residual + LayerNorm ---------------------------------
    h = jnp.maximum(mm(x, w1_ref[...], b1_ref[...]), 0.0)
    ff = mm(h, w2_ref[...], b2_ref[...])
    x = _layer_norm(x + ff, ln3_g_ref[...], ln3_b_ref[...])

    x_sc[...] = x   # carry to next layer

    # --- final projection (lane-dense, vocab padded to 128) + log_softmax --------
    @pl.when(layer == pl.num_programs(1) - 1)
    def _():
        logits = mm(x, outw_ref[...], outb_ref[...])                 # (Lt, VP)
        m = jnp.max(logits, axis=-1, keepdims=True)
        z = logits - m
        o_ref[...] = z - jnp.log(jnp.sum(jnp.exp(z), axis=-1, keepdims=True))


# ------------------------------- parameter init ----------------------------------

def _init_linear(key, din, dout):
    k1, k2 = jax.random.split(key)
    bound = 1.0 / math.sqrt(din)
    w = jax.random.uniform(k1, (dout, din), jnp.float32, -bound, bound)
    b = jax.random.uniform(k2, (dout,), jnp.float32, -bound, bound)
    return w.T, b.reshape(1, dout)  # pre-transposed weight (Din, Dout)


def _init_mha(key, model_dim):
    ks = jax.random.split(key, 4)
    wq_t, bq = _init_linear(ks[0], model_dim, model_dim)
    wk_t, bk = _init_linear(ks[1], model_dim, model_dim)
    wv_t, bv = _init_linear(ks[2], model_dim, model_dim)
    wo_t, bo = _init_linear(ks[3], model_dim, model_dim)
    return (wq_t, bq), (wk_t, bk), (wv_t, bv), (wo_t, bo)


def init_decoder(key, output_dim, model_dim, ff_dim, num_layers, max_len):
    keys = jax.random.split(key, 2 + num_layers)
    emb = jax.random.normal(keys[0], (output_dim, model_dim), jnp.float32)

    # Positional-encoding table.
    pos = jnp.arange(max_len, dtype=jnp.float32)[:, None]
    term = jnp.exp(jnp.arange(0, model_dim, 2, dtype=jnp.float32)
                   * -(math.log(10000.0) / model_dim))
    pe = jnp.zeros((max_len, model_dim), jnp.float32)
    pe = pe.at[:, 0::2].set(jnp.sin(pos * term))
    pe = pe.at[:, 1::2].set(jnp.cos(pos * term))
    pe = pe[:, None, :]  # (max_len, 1, model_dim)

    per_layer = {k: [] for k in (
        'sa_wqkv', 'sa_bqkv', 'sa_wo', 'sa_bo',
        'ea_wq', 'ea_bq', 'ea_wkv', 'ea_bkv', 'ea_wo', 'ea_bo',
        'ln1_g', 'ln1_b', 'ln2_g', 'ln2_b', 'ln3_g', 'ln3_b',
        'w1', 'b1', 'w2', 'b2')}

    for li in range(num_layers):
        ks = jax.random.split(keys[2 + li], 4)
        (sq, sbq), (sk, sbk), (sv, sbv), (swo, sbo) = _init_mha(ks[0], model_dim)
        (eq, ebq), (ek, ebk), (ev, ebv), (ewo, ebo) = _init_mha(ks[1], model_dim)
        w1_t, b1 = _init_linear(ks[2], model_dim, ff_dim)
        w2_t, b2 = _init_linear(ks[3], ff_dim, model_dim)

        per_layer['sa_wqkv'].append(jnp.concatenate([sq, sk, sv], axis=1))   # (D, 3D)
        per_layer['sa_bqkv'].append(jnp.concatenate([sbq, sbk, sbv], axis=1))
        per_layer['sa_wo'].append(swo)
        per_layer['sa_bo'].append(sbo)
        per_layer['ea_wq'].append(eq)
        per_layer['ea_bq'].append(ebq)
        per_layer['ea_wkv'].append(jnp.concatenate([ek, ev], axis=1))        # (D, 2D)
        per_layer['ea_bkv'].append(jnp.concatenate([ebk, ebv], axis=1))
        per_layer['ea_wo'].append(ewo)
        per_layer['ea_bo'].append(ebo)
        for nm in ('ln1', 'ln2', 'ln3'):
            per_layer[nm + '_g'].append(jnp.ones((1, model_dim), jnp.float32))
            per_layer[nm + '_b'].append(jnp.zeros((1, model_dim), jnp.float32))
        per_layer['w1'].append(w1_t)
        per_layer['b1'].append(b1)
        per_layer['w2'].append(w2_t)
        per_layer['b2'].append(b2)

    params = {k: jnp.stack(v, axis=0) for k, v in per_layer.items()}

    # bf16 storage for all matmul weights (halves VMEM residency / weight DMA);
    # biases and LayerNorm params stay f32 (added after f32 accumulation).
    for nm in ('sa_wqkv', 'sa_wo', 'ea_wq', 'ea_wkv', 'ea_wo', 'w1', 'w2'):
        params[nm] = params[nm].astype(jnp.bfloat16)

    params['emb'] = emb
    params['pe'] = pe

    # Final projection, padded to a lane-dense 128-wide output.
    out_w_t, out_b = _init_linear(keys[1], model_dim, output_dim)            # (D, V), (1, V)
    vp = ((output_dim + 127) // 128) * 128
    params['out_w_pad'] = (jnp.zeros((model_dim, vp), jnp.float32)
                           .at[:, :output_dim].set(out_w_t)).astype(jnp.bfloat16)
    params['out_b_pad'] = jnp.full((1, vp), -1e30, jnp.float32).at[:, :output_dim].set(out_b)
    return params


# --------------------------------- forward glue ----------------------------------

def decoder_forward(params, x_ids, encoder_outputs, src_mask, tgt_mask,
                    *, num_heads, vocab):
    D = params['emb'].shape[1]
    num_layers = params['sa_wqkv'].shape[0]
    FF = params['w1'].shape[2]
    Lt, B = x_ids.shape
    Ls = encoder_outputs.shape[0]
    d_k = D // num_heads
    VP = params['out_w_pad'].shape[1]

    # Embedding + positional encoding (plain JAX gather / broadcast).
    embed = jnp.take(params['emb'], x_ids, axis=0) * math.sqrt(D)            # (Lt, B, D)
    x = embed + params['pe'][:Lt]
    # Dropout layers are identity at inference (eval mode).

    # Batch-major per-batch layouts; batch becomes the "parallel" grid axis.
    x3d = x.transpose(1, 0, 2)                                               # (B, Lt, D)
    enc3d = encoder_outputs.transpose(1, 0, 2)                               # (B, Ls, D)

    # Small (Lq, Lk) additive mask biases (1.0 == masked), expanded in-kernel.
    tbias = jnp.where(tgt_mask.astype(jnp.float32) > 0.5,
                      jnp.float32(-1e30), jnp.float32(0.0))                  # (Lt, Lt)
    sbias = jnp.where(src_mask.astype(jnp.float32) > 0.5,
                      jnp.float32(-1e30), jnp.float32(0.0))                  # (Lt, Ls)

    def act_spec(L, W):       # per-batch activation, constant over the layer axis
        return pl.BlockSpec((None, L, W), lambda b, l: (b, 0, 0))

    def const_spec(shape):    # shared across the whole grid
        nd = len(shape)
        return pl.BlockSpec(shape, lambda b, l, _nd=nd: (0,) * _nd)

    def layer_spec(shape):    # per-layer parameter, streamed along the layer axis
        return pl.BlockSpec((None,) + shape, lambda b, l: (l, 0, 0))

    grid_spec = pltpu.PrefetchScalarGridSpec(
        num_scalar_prefetch=0,
        grid=(B, num_layers),                       # batch (parallel), layer (arbitrary)
        in_specs=[
            act_spec(Lt, D),                        # x
            act_spec(Ls, D),                        # encoder outputs
            const_spec((Lt, Lt)),                   # tgt additive bias
            const_spec((Lt, Ls)),                   # src additive bias
            layer_spec((D, 3 * D)), layer_spec((1, 3 * D)),     # sa qkv
            layer_spec((D, D)), layer_spec((1, D)),             # sa out
            layer_spec((D, D)), layer_spec((1, D)),             # ea q
            layer_spec((D, 2 * D)), layer_spec((1, 2 * D)),     # ea kv
            layer_spec((D, D)), layer_spec((1, D)),             # ea out
            layer_spec((1, D)), layer_spec((1, D)),             # ln1
            layer_spec((1, D)), layer_spec((1, D)),             # ln2
            layer_spec((1, D)), layer_spec((1, D)),             # ln3
            layer_spec((D, FF)), layer_spec((1, FF)),           # ffn w1
            layer_spec((FF, D)), layer_spec((1, D)),            # ffn w2
            const_spec((D, VP)), const_spec((1, VP)),           # final projection
        ],
        out_specs=pl.BlockSpec((None, Lt, VP), lambda b, l: (b, 0, 0)),
        scratch_shapes=[pltpu.VMEM((Lt, D), jnp.float32)],      # carried activation
    )

    kernel = functools.partial(_decoder_layer_kernel, num_heads=num_heads, d_k=d_k)
    logp_pad = pl.pallas_call(
        kernel,
        grid_spec=grid_spec,
        out_shape=jax.ShapeDtypeStruct((B, Lt, VP), jnp.float32),
        compiler_params=pltpu.CompilerParams(
            dimension_semantics=("parallel", "arbitrary"),
            vmem_limit_bytes=32 * 1024 * 1024,      # per-step working set << 1 MiB; ample headroom
        ),
    )(x3d, enc3d, tbias, sbias,
      params['sa_wqkv'], params['sa_bqkv'], params['sa_wo'], params['sa_bo'],
      params['ea_wq'], params['ea_bq'], params['ea_wkv'], params['ea_bkv'],
      params['ea_wo'], params['ea_bo'],
      params['ln1_g'], params['ln1_b'], params['ln2_g'], params['ln2_b'],
      params['ln3_g'], params['ln3_b'],
      params['w1'], params['b1'], params['w2'], params['b2'],
      params['out_w_pad'], params['out_b_pad'])

    logp = logp_pad[:, :, :vocab].transpose(1, 0, 2)                         # (Lt, B, V)
    return logp


# --------------------------------------- main ------------------------------------

if __name__ == "__main__":
    output_dim = 16   # vocab size
    model_dim = 32
    ff_dim = 64
    num_layers = 2
    num_heads = 4
    max_len = 32
    tgt_len = 8
    src_len = 8
    batch = 2

    key = jax.random.PRNGKey(0)
    k_param, k_ids, k_enc = jax.random.split(key, 3)

    params = init_decoder(k_param, output_dim, model_dim, ff_dim, num_layers, max_len)

    x_ids = jax.random.randint(k_ids, (tgt_len, batch), 0, output_dim)       # (L_t, B)
    encoder_outputs = jax.random.normal(k_enc, (src_len, batch, model_dim),
                                        jnp.float32)                         # (L_s, B, D)

    # Masks: 1.0 == masked position (PyTorch masked_fill(mask, -inf) semantics).
    tgt_mask = jnp.triu(jnp.ones((tgt_len, tgt_len), jnp.float32), k=1)      # causal
    src_mask = jnp.zeros((tgt_len, src_len), jnp.float32)                    # no masking

    fwd = jax.jit(functools.partial(decoder_forward,
                                    num_heads=num_heads, vocab=output_dim))
    out = fwd(params, x_ids, encoder_outputs, src_mask, tgt_mask)
    out = jax.block_until_ready(out)

    assert out.shape == (tgt_len, batch, output_dim), out.shape
    assert bool(jnp.all(jnp.isfinite(out)))
    print("KERNEL_OK")
</pallas_src>

<mosaic_0001>
module attributes {stable_mosaic.version = 11 : i64} {
  func.func @_decoder_layer_kernel(%arg0: i32, %arg1: i32, %arg2: memref<1x8x32xf32, #tpu.memory_space<vmem>>, %arg3: memref<1x8x32xf32, #tpu.memory_space<vmem>>, %arg4: memref<8x8xf32, #tpu.memory_space<vmem>>, %arg5: memref<8x8xf32, #tpu.memory_space<vmem>>, %arg6: memref<1x32x96xbf16, #tpu.memory_space<vmem>>, %arg7: memref<1x1x96xf32, #tpu.memory_space<vmem>>, %arg8: memref<1x32x32xbf16, #tpu.memory_space<vmem>>, %arg9: memref<1x1x32xf32, #tpu.memory_space<vmem>>, %arg10: memref<1x32x32xbf16, #tpu.memory_space<vmem>>, %arg11: memref<1x1x32xf32, #tpu.memory_space<vmem>>, %arg12: memref<1x32x64xbf16, #tpu.memory_space<vmem>>, %arg13: memref<1x1x64xf32, #tpu.memory_space<vmem>>, %arg14: memref<1x32x32xbf16, #tpu.memory_space<vmem>>, %arg15: memref<1x1x32xf32, #tpu.memory_space<vmem>>, %arg16: memref<1x1x32xf32, #tpu.memory_space<vmem>>, %arg17: memref<1x1x32xf32, #tpu.memory_space<vmem>>, %arg18: memref<1x1x32xf32, #tpu.memory_space<vmem>>, %arg19: memref<1x1x32xf32, #tpu.memory_space<vmem>>, %arg20: memref<1x1x32xf32, #tpu.memory_space<vmem>>, %arg21: memref<1x1x32xf32, #tpu.memory_space<vmem>>, %arg22: memref<1x32x64xbf16, #tpu.memory_space<vmem>>, %arg23: memref<1x1x64xf32, #tpu.memory_space<vmem>>, %arg24: memref<1x64x32xbf16, #tpu.memory_space<vmem>>, %arg25: memref<1x1x32xf32, #tpu.memory_space<vmem>>, %arg26: memref<32x128xbf16, #tpu.memory_space<vmem>>, %arg27: memref<1x128xf32, #tpu.memory_space<vmem>>, %arg28: memref<1x8x128xf32, #tpu.memory_space<vmem>>, %arg29: memref<8x32xf32, #tpu.memory_space<vmem>>) attributes {dimension_semantics = [#tpu.dimension_semantics<parallel>, #tpu.dimension_semantics<arbitrary>], iteration_bounds = array<i64: 2, 2>, scalar_prefetch = 0 : i64, scratch_operands = 1 : i64, tpu.core_type = #tpu.core_type<tc>, window_params = [{transform_indices = @transform_0, window_bounds = array<i64: 1, 8, 32>}, {transform_indices = @transform_1, window_bounds = array<i64: 1, 8, 32>}, {pipeline_mode = #tpu.pipeline_mode<synchronous>, transform_indices = @transform_2, window_bounds = array<i64: 8, 8>}, {pipeline_mode = #tpu.pipeline_mode<synchronous>, transform_indices = @transform_3, window_bounds = array<i64: 8, 8>}, {transform_indices = @transform_4, window_bounds = array<i64: 1, 32, 96>}, {transform_indices = @transform_5, window_bounds = array<i64: 1, 1, 96>}, {transform_indices = @transform_6, window_bounds = array<i64: 1, 32, 32>}, {transform_indices = @transform_7, window_bounds = array<i64: 1, 1, 32>}, {transform_indices = @transform_8, window_bounds = array<i64: 1, 32, 32>}, {transform_indices = @transform_9, window_bounds = array<i64: 1, 1, 32>}, {transform_indices = @transform_10, window_bounds = array<i64: 1, 32, 64>}, {transform_indices = @transform_11, window_bounds = array<i64: 1, 1, 64>}, {transform_indices = @transform_12, window_bounds = array<i64: 1, 32, 32>}, {transform_indices = @transform_13, window_bounds = array<i64: 1, 1, 32>}, {transform_indices = @transform_14, window_bounds = array<i64: 1, 1, 32>}, {transform_indices = @transform_15, window_bounds = array<i64: 1, 1, 32>}, {transform_indices = @transform_16, window_bounds = array<i64: 1, 1, 32>}, {transform_indices = @transform_17, window_bounds = array<i64: 1, 1, 32>}, {transform_indices = @transform_18, window_bounds = array<i64: 1, 1, 32>}, {transform_indices = @transform_19, window_bounds = array<i64: 1, 1, 32>}, {transform_indices = @transform_20, window_bounds = array<i64: 1, 32, 64>}, {transform_indices = @transform_21, window_bounds = array<i64: 1, 1, 64>}, {transform_indices = @transform_22, window_bounds = array<i64: 1, 64, 32>}, {transform_indices = @transform_23, window_bounds = array<i64: 1, 1, 32>}, {pipeline_mode = #tpu.pipeline_mode<synchronous>, transform_indices = @transform_24, window_bounds = array<i64: 32, 128>}, {pipeline_mode = #tpu.pipeline_mode<synchronous>, transform_indices = @transform_25, window_bounds = array<i64: 1, 128>}, {transform_indices = @transform_26, window_bounds = array<i64: 1, 8, 128>}]} {
    %c0_i32 = arith.constant 0 : i32
    %0 = arith.cmpi eq, %arg1, %c0_i32 : i32
    %1 = arith.extui %0 : i1 to i32
    %c0_i32_0 = arith.constant 0 : i32
    %2 = arith.cmpi ne, %1, %c0_i32_0 : i32
    scf.if %2 {
      %c0_104 = arith.constant 0 : index
      %c0_105 = arith.constant 0 : index
      %c0_106 = arith.constant 0 : index
      %270 = vector.load %arg2[%c0_104, %c0_105, %c0_106] : memref<1x8x32xf32, #tpu.memory_space<vmem>>, vector<1x8x32xf32>
      %271 = vector.shape_cast %270 : vector<1x8x32xf32> to vector<8x32xf32>
      %c0_107 = arith.constant 0 : index
      %c0_108 = arith.constant 0 : index
      %272 = vector.load %arg29[%c0_107, %c0_108] : memref<8x32xf32, #tpu.memory_space<vmem>>, vector<8x32xf32>
      tpu.vector_store %arg29[%c0_107, %c0_108], %271 {strides = array<i32>} : memref<8x32xf32, #tpu.memory_space<vmem>>, vector<8x32xf32>,
    } else {
    }
    %c0 = arith.constant 0 : index
    %c0_1 = arith.constant 0 : index
    %3 = vector.load %arg29[%c0, %c0_1] : memref<8x32xf32, #tpu.memory_space<vmem>>, vector<8x32xf32>
    %c0_2 = arith.constant 0 : index
    %c0_3 = arith.constant 0 : index
    %c0_4 = arith.constant 0 : index
    %4 = vector.load %arg3[%c0_2, %c0_3, %c0_4] : memref<1x8x32xf32, #tpu.memory_space<vmem>>, vector<1x8x32xf32>
    %5 = vector.shape_cast %4 : vector<1x8x32xf32> to vector<8x32xf32>
    %c0_5 = arith.constant 0 : index
    %c0_6 = arith.constant 0 : index
    %6 = vector.load %arg4[%c0_5, %c0_6] : memref<8x8xf32, #tpu.memory_space<vmem>>, vector<8x8xf32>
    %c0_7 = arith.constant 0 : index
    %c0_8 = arith.constant 0 : index
    %7 = vector.load %arg5[%c0_7, %c0_8] : memref<8x8xf32, #tpu.memory_space<vmem>>, vector<8x8xf32>
    %c0_9 = arith.constant 0 : index
    %c0_10 = arith.constant 0 : index
    %c0_11 = arith.constant 0 : index
    %8 = vector.load %arg6[%c0_9, %c0_10, %c0_11] : memref<1x32x96xbf16, #tpu.memory_space<vmem>>, vector<1x32x96xbf16>
    %9 = vector.shape_cast %8 : vector<1x32x96xbf16> to vector<32x96xbf16>
    %c0_12 = arith.constant 0 : index
    %c0_13 = arith.constant 0 : index
    %c0_14 = arith.constant 0 : index
    %10 = vector.load %arg7[%c0_12, %c0_13, %c0_14] : memref<1x1x96xf32, #tpu.memory_space<vmem>>, vector<1x1x96xf32>
    %11 = vector.shape_cast %10 : vector<1x1x96xf32> to vector<1x96xf32>
    %12 = arith.truncf %3 : vector<8x32xf32> to vector<8x32xbf16>
    %cst = arith.constant dense<0.000000e+00> : vector<8x96xf32>
    %13 = tpu.matmul %12, %9, %cst {dimension_numbers = #tpu.dot_dimension_numbers<[1], [0], [0], [1], [0, 0, 1, 1], [], []>} : vector<8x32xbf16>, vector<32x96xbf16>, vector<8x96xf32> -> vector<8x96xf32>
    %14 = vector.broadcast %11 : vector<1x96xf32> to vector<8x96xf32>
    %15 = arith.addf %13, %14 : vector<8x96xf32>
    %16 = vector.extract_strided_slice %15 {offsets = [0, 0], sizes = [8, 32], strides = [1, 1]} : vector<8x96xf32> to vector<8x32xf32>
    %17 = vector.extract_strided_slice %15 {offsets = [0, 32], sizes = [8, 32], strides = [1, 1]} : vector<8x96xf32> to vector<8x32xf32>
    %18 = vector.extract_strided_slice %15 {offsets = [0, 64], sizes = [8, 32], strides = [1, 1]} : vector<8x96xf32> to vector<8x32xf32>
    %c0_15 = arith.constant 0 : index
    %c0_16 = arith.constant 0 : index
    %c0_17 = arith.constant 0 : index
    %19 = vector.load %arg8[%c0_15, %c0_16, %c0_17] : memref<1x32x32xbf16, #tpu.memory_space<vmem>>, vector<1x32x32xbf16>
    %20 = vector.shape_cast %19 : vector<1x32x32xbf16> to vector<32x32xbf16>
    %c0_18 = arith.constant 0 : index
    %c0_19 = arith.constant 0 : index
    %c0_20 = arith.constant 0 : index
    %21 = vector.load %arg9[%c0_18, %c0_19, %c0_20] : memref<1x1x32xf32, #tpu.memory_space<vmem>>, vector<1x1x32xf32>
    %22 = vector.shape_cast %21 : vector<1x1x32xf32> to vector<1x32xf32>
    %23 = vector.extract_strided_slice %16 {offsets = [0, 0], sizes = [8, 8], strides = [1, 1]} : vector<8x32xf32> to vector<8x8xf32>
    %24 = vector.extract_strided_slice %16 {offsets = [0, 8], sizes = [8, 8], strides = [1, 1]} : vector<8x32xf32> to vector<8x8xf32>
    %25 = vector.extract_strided_slice %16 {offsets = [0, 16], sizes = [8, 8], strides = [1, 1]} : vector<8x32xf32> to vector<8x8xf32>
    %26 = vector.extract_strided_slice %16 {offsets = [0, 24], sizes = [8, 8], strides = [1, 1]} : vector<8x32xf32> to vector<8x8xf32>
    %27 = vector.shape_cast %23 : vector<8x8xf32> to vector<1x8x8xf32>
    %28 = vector.shape_cast %24 : vector<8x8xf32> to vector<1x8x8xf32>
    %29 = vector.shape_cast %25 : vector<8x8xf32> to vector<1x8x8xf32>
    %30 = vector.shape_cast %26 : vector<8x8xf32> to vector<1x8x8xf32>
    %31 = tpu.concatenate %27, %28, %29, %30 in 0 : vector<1x8x8xf32>, vector<1x8x8xf32>, vector<1x8x8xf32>, vector<1x8x8xf32> -> vector<4x8x8xf32>
    %32 = arith.truncf %31 : vector<4x8x8xf32> to vector<4x8x8xbf16>
    %33 = vector.extract_strided_slice %17 {offsets = [0, 0], sizes = [8, 8], strides = [1, 1]} : vector<8x32xf32> to vector<8x8xf32>
    %34 = vector.extract_strided_slice %17 {offsets = [0, 8], sizes = [8, 8], strides = [1, 1]} : vector<8x32xf32> to vector<8x8xf32>
    %35 = vector.extract_strided_slice %17 {offsets = [0, 16], sizes = [8, 8], strides = [1, 1]} : vector<8x32xf32> to vector<8x8xf32>
    %36 = vector.extract_strided_slice %17 {offsets = [0, 24], sizes = [8, 8], strides = [1, 1]} : vector<8x32xf32> to vector<8x8xf32>
    %37 = vector.shape_cast %33 : vector<8x8xf32> to vector<1x8x8xf32>
    %38 = vector.shape_cast %34 : vector<8x8xf32> to vector<1x8x8xf32>
    %39 = vector.shape_cast %35 : vector<8x8xf32> to vector<1x8x8xf32>
    %40 = vector.shape_cast %36 : vector<8x8xf32> to vector<1x8x8xf32>
    %41 = tpu.concatenate %37, %38, %39, %40 in 0 : vector<1x8x8xf32>, vector<1x8x8xf32>, vector<1x8x8xf32>, vector<1x8x8xf32> -> vector<4x8x8xf32>
    %42 = arith.truncf %41 : vector<4x8x8xf32> to vector<4x8x8xbf16>
    %43 = vector.extract_strided_slice %18 {offsets = [0, 0], sizes = [8, 8], strides = [1, 1]} : vector<8x32xf32> to vector<8x8xf32>
    %44 = vector.extract_strided_slice %18 {offsets = [0, 8], sizes = [8, 8], strides = [1, 1]} : vector<8x32xf32> to vector<8x8xf32>
    %45 = vector.extract_strided_slice %18 {offsets = [0, 16], sizes = [8, 8], strides = [1, 1]} : vector<8x32xf32> to vector<8x8xf32>
    %46 = vector.extract_strided_slice %18 {offsets = [0, 24], sizes = [8, 8], strides = [1, 1]} : vector<8x32xf32> to vector<8x8xf32>
    %47 = vector.shape_cast %43 : vector<8x8xf32> to vector<1x8x8xf32>
    %48 = vector.shape_cast %44 : vector<8x8xf32> to vector<1x8x8xf32>
    %49 = vector.shape_cast %45 : vector<8x8xf32> to vector<1x8x8xf32>
    %50 = vector.shape_cast %46 : vector<8x8xf32> to vector<1x8x8xf32>
    %51 = tpu.concatenate %47, %48, %49, %50 in 0 : vector<1x8x8xf32>, vector<1x8x8xf32>, vector<1x8x8xf32>, vector<1x8x8xf32> -> vector<4x8x8xf32>
    %52 = arith.truncf %51 : vector<4x8x8xf32> to vector<4x8x8xbf16>
    "tpu.trace_start"() <{level = 10 : i32, message = "hmd,hnd->hmn"}> : () -> ()
    %cst_21 = arith.constant dense<0.000000e+00> : vector<4x8x8xf32>
    %53 = tpu.matmul %32, %42, %cst_21 {dimension_numbers = #tpu.dot_dimension_numbers<[2], [2], [1], [1], [0, 0, 0, 1, 1, 1], [0], [0]>} : vector<4x8x8xbf16>, vector<4x8x8xbf16>, vector<4x8x8xf32> -> vector<4x8x8xf32>
    "tpu.trace_stop"() : () -> ()
    %cst_22 = arith.constant 0.353553385 : f32
    %54 = vector.broadcast %cst_22 : f32 to vector<4x8x8xf32>
    %55 = arith.mulf %53, %54 : vector<4x8x8xf32>
    %56 = vector.shape_cast %6 : vector<8x8xf32> to vector<1x8x8xf32>
    %57 = vector.broadcast %56 : vector<1x8x8xf32> to vector<4x8x8xf32>
    %58 = arith.addf %55, %57 : vector<4x8x8xf32>
    %cst_23 = arith.constant dense<0xFF800000> : vector<4x8xf32>
    %59 = vector.multi_reduction <maximumf>, %58, %cst_23 [2] : vector<4x8x8xf32> to vector<4x8xf32>
    %60 = vector.shape_cast %59 : vector<4x8xf32> to vector<4x8x1xf32>
    %61 = vector.broadcast %60 : vector<4x8x1xf32> to vector<4x8x8xf32>
    %62 = arith.subf %58, %61 : vector<4x8x8xf32>
    %63 = math.exp %62 : vector<4x8x8xf32>
    %cst_24 = arith.constant dense<0.000000e+00> : vector<4x8xf32>
    %64 = vector.multi_reduction <add>, %63, %cst_24 [2] : vector<4x8x8xf32> to vector<4x8xf32>
    %65 = vector.shape_cast %64 : vector<4x8xf32> to vector<4x8x1xf32>
    %66 = tpu.reciprocal %65 {approx = true} : vector<4x8x1xf32> -> vector<4x8x1xf32>
    %67 = vector.broadcast %66 : vector<4x8x1xf32> to vector<4x8x8xf32>
    %68 = arith.mulf %63, %67 : vector<4x8x8xf32>
    %69 = arith.truncf %68 : vector<4x8x8xf32> to vector<4x8x8xbf16>
    "tpu.trace_start"() <{level = 10 : i32, message = "hmn,hnd->hmd"}> : () -> ()
    %cst_25 = arith.constant dense<0.000000e+00> : vector<4x8x8xf32>
    %70 = tpu.matmul %69, %52, %cst_25 {dimension_numbers = #tpu.dot_dimension_numbers<[2], [1], [1], [2], [0, 0, 0, 1, 1, 2], [0], [0]>} : vector<4x8x8xbf16>, vector<4x8x8xbf16>, vector<4x8x8xf32> -> vector<4x8x8xf32>
    "tpu.trace_stop"() : () -> ()
    %71 = vector.extract_strided_slice %70 {offsets = [0, 0, 0], sizes = [1, 8, 8], strides = [1, 1, 1]} : vector<4x8x8xf32> to vector<1x8x8xf32>
    %72 = vector.shape_cast %71 : vector<1x8x8xf32> to vector<8x8xf32>
    %73 = vector.extract_strided_slice %70 {offsets = [1, 0, 0], sizes = [1, 8, 8], strides = [1, 1, 1]} : vector<4x8x8xf32> to vector<1x8x8xf32>
    %74 = vector.shape_cast %73 : vector<1x8x8xf32> to vector<8x8xf32>
    %75 = vector.extract_strided_slice %70 {offsets = [2, 0, 0], sizes = [1, 8, 8], strides = [1, 1, 1]} : vector<4x8x8xf32> to vector<1x8x8xf32>
    %76 = vector.shape_cast %75 : vector<1x8x8xf32> to vector<8x8xf32>
    %77 = vector.extract_strided_slice %70 {offsets = [3, 0, 0], sizes = [1, 8, 8], strides = [1, 1, 1]} : vector<4x8x8xf32> to vector<1x8x8xf32>
    %78 = vector.shape_cast %77 : vector<1x8x8xf32> to vector<8x8xf32>
    %79 = tpu.concatenate %72, %74, %76, %78 in 1 : vector<8x8xf32>, vector<8x8xf32>, vector<8x8xf32>, vector<8x8xf32> -> vector<8x32xf32>
    %80 = arith.truncf %79 : vector<8x32xf32> to vector<8x32xbf16>
    %cst_26 = arith.constant dense<0.000000e+00> : vector<8x32xf32>
    %81 = tpu.matmul %80, %20, %cst_26 {dimension_numbers = #tpu.dot_dimension_numbers<[1], [0], [0], [1], [0, 0, 1, 1], [], []>} : vector<8x32xbf16>, vector<32x32xbf16>, vector<8x32xf32> -> vector<8x32xf32>
    %82 = vector.broadcast %22 : vector<1x32xf32> to vector<8x32xf32>
    %83 = arith.addf %81, %82 : vector<8x32xf32>
    %84 = arith.addf %3, %83 : vector<8x32xf32>
    %c0_27 = arith.constant 0 : index
    %c0_28 = arith.constant 0 : index
    %c0_29 = arith.constant 0 : index
    %85 = vector.load %arg16[%c0_27, %c0_28, %c0_29] : memref<1x1x32xf32, #tpu.memory_space<vmem>>, vector<1x1x32xf32>
    %86 = vector.shape_cast %85 : vector<1x1x32xf32> to vector<1x32xf32>
    %c0_30 = arith.constant 0 : index
    %c0_31 = arith.constant 0 : index
    %c0_32 = arith.constant 0 : index
    %87 = vector.load %arg17[%c0_30, %c0_31, %c0_32] : memref<1x1x32xf32, #tpu.memory_space<vmem>>, vector<1x1x32xf32>
    %88 = vector.shape_cast %87 : vector<1x1x32xf32> to vector<1x32xf32>
    %cst_33 = arith.constant dense<0.000000e+00> : vector<8xf32>
    %89 = vector.multi_reduction <add>, %84, %cst_33 [1] : vector<8x32xf32> to vector<8xf32>
    %90 = vector.shape_cast %89 : vector<8xf32> to vector<8x1xf32>
    %cst_34 = arith.constant 3.200000e+01 : f32
    %91 = vector.broadcast %cst_34 : f32 to vector<8x1xf32>
    %92 = arith.divf %90, %91 : vector<8x1xf32>
    %93 = vector.broadcast %92 : vector<8x1xf32> to vector<8x32xf32>
    %94 = arith.subf %84, %93 : vector<8x32xf32>
    %95 = arith.mulf %94, %94 : vector<8x32xf32>
    %cst_35 = arith.constant dense<0.000000e+00> : vector<8xf32>
    %96 = vector.multi_reduction <add>, %95, %cst_35 [1] : vector<8x32xf32> to vector<8xf32>
    %97 = vector.shape_cast %96 : vector<8xf32> to vector<8x1xf32>
    %cst_36 = arith.constant 3.200000e+01 : f32
    %98 = vector.broadcast %cst_36 : f32 to vector<8x1xf32>
    %99 = arith.divf %97, %98 : vector<8x1xf32>
    %100 = vector.broadcast %92 : vector<8x1xf32> to vector<8x32xf32>
    %101 = arith.subf %84, %100 : vector<8x32xf32>
    %cst_37 = arith.constant 9.99999974E-6 : f32
    %102 = vector.broadcast %cst_37 : f32 to vector<8x1xf32>
    %103 = arith.addf %99, %102 : vector<8x1xf32>
    %104 = math.rsqrt %103 : vector<8x1xf32>
    %105 = vector.broadcast %104 : vector<8x1xf32> to vector<8x32xf32>
    %106 = arith.mulf %101, %105 : vector<8x32xf32>
    %107 = vector.broadcast %86 : vector<1x32xf32> to vector<8x32xf32>
    %108 = arith.mulf %106, %107 : vector<8x32xf32>
    %109 = vector.broadcast %88 : vector<1x32xf32> to vector<8x32xf32>
    %110 = arith.addf %108, %109 : vector<8x32xf32>
    %c0_38 = arith.constant 0 : index
    %c0_39 = arith.constant 0 : index
    %c0_40 = arith.constant 0 : index
    %111 = vector.load %arg10[%c0_38, %c0_39, %c0_40] : memref<1x32x32xbf16, #tpu.memory_space<vmem>>, vector<1x32x32xbf16>
    %112 = vector.shape_cast %111 : vector<1x32x32xbf16> to vector<32x32xbf16>
    %c0_41 = arith.constant 0 : index
    %c0_42 = arith.constant 0 : index
    %c0_43 = arith.constant 0 : index
    %113 = vector.load %arg11[%c0_41, %c0_42, %c0_43] : memref<1x1x32xf32, #tpu.memory_space<vmem>>, vector<1x1x32xf32>
    %114 = vector.shape_cast %113 : vector<1x1x32xf32> to vector<1x32xf32>
    %115 = arith.truncf %110 : vector<8x32xf32> to vector<8x32xbf16>
    %cst_44 = arith.constant dense<0.000000e+00> : vector<8x32xf32>
    %116 = tpu.matmul %115, %112, %cst_44 {dimension_numbers = #tpu.dot_dimension_numbers<[1], [0], [0], [1], [0, 0, 1, 1], [], []>} : vector<8x32xbf16>, vector<32x32xbf16>, vector<8x32xf32> -> vector<8x32xf32>
    %117 = vector.broadcast %114 : vector<1x32xf32> to vector<8x32xf32>
    %118 = arith.addf %116, %117 : vector<8x32xf32>
    %c0_45 = arith.constant 0 : index
    %c0_46 = arith.constant 0 : index
    %c0_47 = arith.constant 0 : index
    %119 = vector.load %arg12[%c0_45, %c0_46, %c0_47] : memref<1x32x64xbf16, #tpu.memory_space<vmem>>, vector<1x32x64xbf16>
    %120 = vector.shape_cast %119 : vector<1x32x64xbf16> to vector<32x64xbf16>
    %c0_48 = arith.constant 0 : index
    %c0_49 = arith.constant 0 : index
    %c0_50 = arith.constant 0 : index
    %121 = vector.load %arg13[%c0_48, %c0_49, %c0_50] : memref<1x1x64xf32, #tpu.memory_space<vmem>>, vector<1x1x64xf32>
    %122 = vector.shape_cast %121 : vector<1x1x64xf32> to vector<1x64xf32>
    %123 = arith.truncf %5 : vector<8x32xf32> to vector<8x32xbf16>
    %cst_51 = arith.constant dense<0.000000e+00> : vector<8x64xf32>
    %124 = tpu.matmul %123, %120, %cst_51 {dimension_numbers = #tpu.dot_dimension_numbers<[1], [0], [0], [1], [0, 0, 1, 1], [], []>} : vector<8x32xbf16>, vector<32x64xbf16>, vector<8x64xf32> -> vector<8x64xf32>
    %125 = vector.broadcast %122 : vector<1x64xf32> to vector<8x64xf32>
    %126 = arith.addf %124, %125 : vector<8x64xf32>
    %127 = vector.extract_strided_slice %126 {offsets = [0, 0], sizes = [8, 32], strides = [1, 1]} : vector<8x64xf32> to vector<8x32xf32>
    %128 = vector.extract_strided_slice %126 {offsets = [0, 32], sizes = [8, 32], strides = [1, 1]} : vector<8x64xf32> to vector<8x32xf32>
    %c0_52 = arith.constant 0 : index
    %c0_53 = arith.constant 0 : index
    %c0_54 = arith.constant 0 : index
    %129 = vector.load %arg14[%c0_52, %c0_53, %c0_54] : memref<1x32x32xbf16, #tpu.memory_space<vmem>>, vector<1x32x32xbf16>
    %130 = vector.shape_cast %129 : vector<1x32x32xbf16> to vector<32x32xbf16>
    %c0_55 = arith.constant 0 : index
    %c0_56 = arith.constant 0 : index
    %c0_57 = arith.constant 0 : index
    %131 = vector.load %arg15[%c0_55, %c0_56, %c0_57] : memref<1x1x32xf32, #tpu.memory_space<vmem>>, vector<1x1x32xf32>
    %132 = vector.shape_cast %131 : vector<1x1x32xf32> to vector<1x32xf32>
    %133 = vector.extract_strided_slice %118 {offsets = [0, 0], sizes = [8, 8], strides = [1, 1]} : vector<8x32xf32> to vector<8x8xf32>
    %134 = vector.extract_strided_slice %118 {offsets = [0, 8], sizes = [8, 8], strides = [1, 1]} : vector<8x32xf32> to vector<8x8xf32>
    %135 = vector.extract_strided_slice %118 {offsets = [0, 16], sizes = [8, 8], strides = [1, 1]} : vector<8x32xf32> to vector<8x8xf32>
    %136 = vector.extract_strided_slice %118 {offsets = [0, 24], sizes = [8, 8], strides = [1, 1]} : vector<8x32xf32> to vector<8x8xf32>
    %137 = vector.shape_cast %133 : vector<8x8xf32> to vector<1x8x8xf32>
    %138 = vector.shape_cast %134 : vector<8x8xf32> to vector<1x8x8xf32>
    %139 = vector.shape_cast %135 : vector<8x8xf32> to vector<1x8x8xf32>
    %140 = vector.shape_cast %136 : vector<8x8xf32> to vector<1x8x8xf32>
    %141 = tpu.concatenate %137, %138, %139, %140 in 0 : vector<1x8x8xf32>, vector<1x8x8xf32>, vector<1x8x8xf32>, vector<1x8x8xf32> -> vector<4x8x8xf32>
    %142 = arith.truncf %141 : vector<4x8x8xf32> to vector<4x8x8xbf16>
    %143 = vector.extract_strided_slice %127 {offsets = [0, 0], sizes = [8, 8], strides = [1, 1]} : vector<8x32xf32> to vector<8x8xf32>
    %144 = vector.extract_strided_slice %127 {offsets = [0, 8], sizes = [8, 8], strides = [1, 1]} : vector<8x32xf32> to vector<8x8xf32>
    %145 = vector.extract_strided_slice %127 {offsets = [0, 16], sizes = [8, 8], strides = [1, 1]} : vector<8x32xf32> to vector<8x8xf32>
    %146 = vector.extract_strided_slice %127 {offsets = [0, 24], sizes = [8, 8], strides = [1, 1]} : vector<8x32xf32> to vector<8x8xf32>
    %147 = vector.shape_cast %143 : vector<8x8xf32> to vector<1x8x8xf32>
    %148 = vector.shape_cast %144 : vector<8x8xf32> to vector<1x8x8xf32>
    %149 = vector.shape_cast %145 : vector<8x8xf32> to vector<1x8x8xf32>
    %150 = vector.shape_cast %146 : vector<8x8xf32> to vector<1x8x8xf32>
    %151 = tpu.concatenate %147, %148, %149, %150 in 0 : vector<1x8x8xf32>, vector<1x8x8xf32>, vector<1x8x8xf32>, vector<1x8x8xf32> -> vector<4x8x8xf32>
    %152 = arith.truncf %151 : vector<4x8x8xf32> to vector<4x8x8xbf16>
    %153 = vector.extract_strided_slice %128 {offsets = [0, 0], sizes = [8, 8], strides = [1, 1]} : vector<8x32xf32> to vector<8x8xf32>
    %154 = vector.extract_strided_slice %128 {offsets = [0, 8], sizes = [8, 8], strides = [1, 1]} : vector<8x32xf32> to vector<8x8xf32>
    %155 = vector.extract_strided_slice %128 {offsets = [0, 16], sizes = [8, 8], strides = [1, 1]} : vector<8x32xf32> to vector<8x8xf32>
    %156 = vector.extract_strided_slice %128 {offsets = [0, 24], sizes = [8, 8], strides = [1, 1]} : vector<8x32xf32> to vector<8x8xf32>
    %157 = vector.shape_cast %153 : vector<8x8xf32> to vector<1x8x8xf32>
    %158 = vector.shape_cast %154 : vector<8x8xf32> to vector<1x8x8xf32>
    %159 = vector.shape_cast %155 : vector<8x8xf32> to vector<1x8x8xf32>
    %160 = vector.shape_cast %156 : vector<8x8xf32> to vector<1x8x8xf32>
    %161 = tpu.concatenate %157, %158, %159, %160 in 0 : vector<1x8x8xf32>, vector<1x8x8xf32>, vector<1x8x8xf32>, vector<1x8x8xf32> -> vector<4x8x8xf32>
    %162 = arith.truncf %161 : vector<4x8x8xf32> to vector<4x8x8xbf16>
    "tpu.trace_start"() <{level = 10 : i32, message = "hmd,hnd->hmn"}> : () -> ()
    %cst_58 = arith.constant dense<0.000000e+00> : vector<4x8x8xf32>
    %163 = tpu.matmul %142, %152, %cst_58 {dimension_numbers = #tpu.dot_dimension_numbers<[2], [2], [1], [1], [0, 0, 0, 1, 1, 1], [0], [0]>} : vector<4x8x8xbf16>, vector<4x8x8xbf16>, vector<4x8x8xf32> -> vector<4x8x8xf32>
    "tpu.trace_stop"() : () -> ()
    %cst_59 = arith.constant 0.353553385 : f32
    %164 = vector.broadcast %cst_59 : f32 to vector<4x8x8xf32>
    %165 = arith.mulf %163, %164 : vector<4x8x8xf32>
    %166 = vector.shape_cast %7 : vector<8x8xf32> to vector<1x8x8xf32>
    %167 = vector.broadcast %166 : vector<1x8x8xf32> to vector<4x8x8xf32>
    %168 = arith.addf %165, %167 : vector<4x8x8xf32>
    %cst_60 = arith.constant dense<0xFF800000> : vector<4x8xf32>
    %169 = vector.multi_reduction <maximumf>, %168, %cst_60 [2] : vector<4x8x8xf32> to vector<4x8xf32>
    %170 = vector.shape_cast %169 : vector<4x8xf32> to vector<4x8x1xf32>
    %171 = vector.broadcast %170 : vector<4x8x1xf32> to vector<4x8x8xf32>
    %172 = arith.subf %168, %171 : vector<4x8x8xf32>
    %173 = math.exp %172 : vector<4x8x8xf32>
    %cst_61 = arith.constant dense<0.000000e+00> : vector<4x8xf32>
    %174 = vector.multi_reduction <add>, %173, %cst_61 [2] : vector<4x8x8xf32> to vector<4x8xf32>
    %175 = vector.shape_cast %174 : vector<4x8xf32> to vector<4x8x1xf32>
    %176 = tpu.reciprocal %175 {approx = true} : vector<4x8x1xf32> -> vector<4x8x1xf32>
    %177 = vector.broadcast %176 : vector<4x8x1xf32> to vector<4x8x8xf32>
    %178 = arith.mulf %173, %177 : vector<4x8x8xf32>
    %179 = arith.truncf %178 : vector<4x8x8xf32> to vector<4x8x8xbf16>
    "tpu.trace_start"() <{level = 10 : i32, message = "hmn,hnd->hmd"}> : () -> ()
    %cst_62 = arith.constant dense<0.000000e+00> : vector<4x8x8xf32>
    %180 = tpu.matmul %179, %162, %cst_62 {dimension_numbers = #tpu.dot_dimension_numbers<[2], [1], [1], [2], [0, 0, 0, 1, 1, 2], [0], [0]>} : vector<4x8x8xbf16>, vector<4x8x8xbf16>, vector<4x8x8xf32> -> vector<4x8x8xf32>
    "tpu.trace_stop"() : () -> ()
    %181 = vector.extract_strided_slice %180 {offsets = [0, 0, 0], sizes = [1, 8, 8], strides = [1, 1, 1]} : vector<4x8x8xf32> to vector<1x8x8xf32>
    %182 = vector.shape_cast %181 : vector<1x8x8xf32> to vector<8x8xf32>
    %183 = vector.extract_strided_slice %180 {offsets = [1, 0, 0], sizes = [1, 8, 8], strides = [1, 1, 1]} : vector<4x8x8xf32> to vector<1x8x8xf32>
    %184 = vector.shape_cast %183 : vector<1x8x8xf32> to vector<8x8xf32>
    %185 = vector.extract_strided_slice %180 {offsets = [2, 0, 0], sizes = [1, 8, 8], strides = [1, 1, 1]} : vector<4x8x8xf32> to vector<1x8x8xf32>
    %186 = vector.shape_cast %185 : vector<1x8x8xf32> to vector<8x8xf32>
    %187 = vector.extract_strided_slice %180 {offsets = [3, 0, 0], sizes = [1, 8, 8], strides = [1, 1, 1]} : vector<4x8x8xf32> to vector<1x8x8xf32>
    %188 = vector.shape_cast %187 : vector<1x8x8xf32> to vector<8x8xf32>
    %189 = tpu.concatenate %182, %184, %186, %188 in 1 : vector<8x8xf32>, vector<8x8xf32>, vector<8x8xf32>, vector<8x8xf32> -> vector<8x32xf32>
    %190 = arith.truncf %189 : vector<8x32xf32> to vector<8x32xbf16>
    %cst_63 = arith.constant dense<0.000000e+00> : vector<8x32xf32>
    %191 = tpu.matmul %190, %130, %cst_63 {dimension_numbers = #tpu.dot_dimension_numbers<[1], [0], [0], [1], [0, 0, 1, 1], [], []>} : vector<8x32xbf16>, vector<32x32xbf16>, vector<8x32xf32> -> vector<8x32xf32>
    %192 = vector.broadcast %132 : vector<1x32xf32> to vector<8x32xf32>
    %193 = arith.addf %191, %192 : vector<8x32xf32>
    %194 = arith.addf %110, %193 : vector<8x32xf32>
    %c0_64 = arith.constant 0 : index
    %c0_65 = arith.constant 0 : index
    %c0_66 = arith.constant 0 : index
    %195 = vector.load %arg18[%c0_64, %c0_65, %c0_66] : memref<1x1x32xf32, #tpu.memory_space<vmem>>, vector<1x1x32xf32>
    %196 = vector.shape_cast %195 : vector<1x1x32xf32> to vector<1x32xf32>
    %c0_67 = arith.constant 0 : index
    %c0_68 = arith.constant 0 : index
    %c0_69 = arith.constant 0 : index
    %197 = vector.load %arg19[%c0_67, %c0_68, %c0_69] : memref<1x1x32xf32, #tpu.memory_space<vmem>>, vector<1x1x32xf32>
    %198 = vector.shape_cast %197 : vector<1x1x32xf32> to vector<1x32xf32>
    %cst_70 = arith.constant dense<0.000000e+00> : vector<8xf32>
    %199 = vector.multi_reduction <add>, %194, %cst_70 [1] : vector<8x32xf32> to vector<8xf32>
    %200 = vector.shape_cast %199 : vector<8xf32> to vector<8x1xf32>
    %cst_71 = arith.constant 3.200000e+01 : f32
    %201 = vector.broadcast %cst_71 : f32 to vector<8x1xf32>
    %202 = arith.divf %200, %201 : vector<8x1xf32>
    %203 = vector.broadcast %202 : vector<8x1xf32> to vector<8x32xf32>
    %204 = arith.subf %194, %203 : vector<8x32xf32>
    %205 = arith.mulf %204, %204 : vector<8x32xf32>
    %cst_72 = arith.constant dense<0.000000e+00> : vector<8xf32>
    %206 = vector.multi_reduction <add>, %205, %cst_72 [1] : vector<8x32xf32> to vector<8xf32>
    %207 = vector.shape_cast %206 : vector<8xf32> to vector<8x1xf32>
    %cst_73 = arith.constant 3.200000e+01 : f32
    %208 = vector.broadcast %cst_73 : f32 to vector<8x1xf32>
    %209 = arith.divf %207, %208 : vector<8x1xf32>
    %210 = vector.broadcast %202 : vector<8x1xf32> to vector<8x32xf32>
    %211 = arith.subf %194, %210 : vector<8x32xf32>
    %cst_74 = arith.constant 9.99999974E-6 : f32
    %212 = vector.broadcast %cst_74 : f32 to vector<8x1xf32>
    %213 = arith.addf %209, %212 : vector<8x1xf32>
    %214 = math.rsqrt %213 : vector<8x1xf32>
    %215 = vector.broadcast %214 : vector<8x1xf32> to vector<8x32xf32>
    %216 = arith.mulf %211, %215 : vector<8x32xf32>
    %217 = vector.broadcast %196 : vector<1x32xf32> to vector<8x32xf32>
    %218 = arith.mulf %216, %217 : vector<8x32xf32>
    %219 = vector.broadcast %198 : vector<1x32xf32> to vector<8x32xf32>
    %220 = arith.addf %218, %219 : vector<8x32xf32>
    %c0_75 = arith.constant 0 : index
    %c0_76 = arith.constant 0 : index
    %c0_77 = arith.constant 0 : index
    %221 = vector.load %arg22[%c0_75, %c0_76, %c0_77] : memref<1x32x64xbf16, #tpu.memory_space<vmem>>, vector<1x32x64xbf16>
    %222 = vector.shape_cast %221 : vector<1x32x64xbf16> to vector<32x64xbf16>
    %c0_78 = arith.constant 0 : index
    %c0_79 = arith.constant 0 : index
    %c0_80 = arith.constant 0 : index
    %223 = vector.load %arg23[%c0_78, %c0_79, %c0_80] : memref<1x1x64xf32, #tpu.memory_space<vmem>>, vector<1x1x64xf32>
    %224 = vector.shape_cast %223 : vector<1x1x64xf32> to vector<1x64xf32>
    %225 = arith.truncf %220 : vector<8x32xf32> to vector<8x32xbf16>
    %cst_81 = arith.constant dense<0.000000e+00> : vector<8x64xf32>
    %226 = tpu.matmul %225, %222, %cst_81 {dimension_numbers = #tpu.dot_dimension_numbers<[1], [0], [0], [1], [0, 0, 1, 1], [], []>} : vector<8x32xbf16>, vector<32x64xbf16>, vector<8x64xf32> -> vector<8x64xf32>
    %227 = vector.broadcast %224 : vector<1x64xf32> to vector<8x64xf32>
    %228 = arith.addf %226, %227 : vector<8x64xf32>
    %cst_82 = arith.constant 0.000000e+00 : f32
    %229 = vector.broadcast %cst_82 : f32 to vector<8x64xf32>
    %230 = arith.maximumf %228, %229 : vector<8x64xf32>
    %c0_83 = arith.constant 0 : index
    %c0_84 = arith.constant 0 : index
    %c0_85 = arith.constant 0 : index
    %231 = vector.load %arg24[%c0_83, %c0_84, %c0_85] : memref<1x64x32xbf16, #tpu.memory_space<vmem>>, vector<1x64x32xbf16>
    %232 = vector.shape_cast %231 : vector<1x64x32xbf16> to vector<64x32xbf16>
    %c0_86 = arith.constant 0 : index
    %c0_87 = arith.constant 0 : index
    %c0_88 = arith.constant 0 : index
    %233 = vector.load %arg25[%c0_86, %c0_87, %c0_88] : memref<1x1x32xf32, #tpu.memory_space<vmem>>, vector<1x1x32xf32>
    %234 = vector.shape_cast %233 : vector<1x1x32xf32> to vector<1x32xf32>
    %235 = arith.truncf %230 : vector<8x64xf32> to vector<8x64xbf16>
    %cst_89 = arith.constant dense<0.000000e+00> : vector<8x32xf32>
    %236 = tpu.matmul %235, %232, %cst_89 {dimension_numbers = #tpu.dot_dimension_numbers<[1], [0], [0], [1], [0, 0, 1, 1], [], []>} : vector<8x64xbf16>, vector<64x32xbf16>, vector<8x32xf32> -> vector<8x32xf32>
    %237 = vector.broadcast %234 : vector<1x32xf32> to vector<8x32xf32>
    %238 = arith.addf %236, %237 : vector<8x32xf32>
    %239 = arith.addf %220, %238 : vector<8x32xf32>
    %c0_90 = arith.constant 0 : index
    %c0_91 = arith.constant 0 : index
    %c0_92 = arith.constant 0 : index
    %240 = vector.load %arg20[%c0_90, %c0_91, %c0_92] : memref<1x1x32xf32, #tpu.memory_space<vmem>>, vector<1x1x32xf32>
    %241 = vector.shape_cast %240 : vector<1x1x32xf32> to vector<1x32xf32>
    %c0_93 = arith.constant 0 : index
    %c0_94 = arith.constant 0 : index
    %c0_95 = arith.constant 0 : index
    %242 = vector.load %arg21[%c0_93, %c0_94, %c0_95] : memref<1x1x32xf32, #tpu.memory_space<vmem>>, vector<1x1x32xf32>
    %243 = vector.shape_cast %242 : vector<1x1x32xf32> to vector<1x32xf32>
    %cst_96 = arith.constant dense<0.000000e+00> : vector<8xf32>
    %244 = vector.multi_reduction <add>, %239, %cst_96 [1] : vector<8x32xf32> to vector<8xf32>
    %245 = vector.shape_cast %244 : vector<8xf32> to vector<8x1xf32>
    %cst_97 = arith.constant 3.200000e+01 : f32
    %246 = vector.broadcast %cst_97 : f32 to vector<8x1xf32>
    %247 = arith.divf %245, %246 : vector<8x1xf32>
    %248 = vector.broadcast %247 : vector<8x1xf32> to vector<8x32xf32>
    %249 = arith.subf %239, %248 : vector<8x32xf32>
    %250 = arith.mulf %249, %249 : vector<8x32xf32>
    %cst_98 = arith.constant dense<0.000000e+00> : vector<8xf32>
    %251 = vector.multi_reduction <add>, %250, %cst_98 [1] : vector<8x32xf32> to vector<8xf32>
    %252 = vector.shape_cast %251 : vector<8xf32> to vector<8x1xf32>
    %cst_99 = arith.constant 3.200000e+01 : f32
    %253 = vector.broadcast %cst_99 : f32 to vector<8x1xf32>
    %254 = arith.divf %252, %253 : vector<8x1xf32>
    %255 = vector.broadcast %247 : vector<8x1xf32> to vector<8x32xf32>
    %256 = arith.subf %239, %255 : vector<8x32xf32>
    %cst_100 = arith.constant 9.99999974E-6 : f32
    %257 = vector.broadcast %cst_100 : f32 to vector<8x1xf32>
    %258 = arith.addf %254, %257 : vector<8x1xf32>
    %259 = math.rsqrt %258 : vector<8x1xf32>
    %260 = vector.broadcast %259 : vector<8x1xf32> to vector<8x32xf32>
    %261 = arith.mulf %256, %260 : vector<8x32xf32>
    %262 = vector.broadcast %241 : vector<1x32xf32> to vector<8x32xf32>
    %263 = arith.mulf %261, %262 : vector<8x32xf32>
    %264 = vector.broadcast %243 : vector<1x32xf32> to vector<8x32xf32>
    %265 = arith.addf %263, %264 : vector<8x32xf32>
    %c0_101 = arith.constant 0 : index
    %c0_102 = arith.constant 0 : index
    %266 = vector.load %arg29[%c0_101, %c0_102] : memref<8x32xf32, #tpu.memory_space<vmem>>, vector<8x32xf32>
    tpu.vector_store %arg29[%c0_101, %c0_102], %265 {strides = array<i32>} : memref<8x32xf32, #tpu.memory_space<vmem>>, vector<8x32xf32>,
    %c1_i32 = arith.constant 1 : i32
    %267 = arith.cmpi eq, %arg1, %c1_i32 : i32
    %268 = arith.extui %267 : i1 to i32
    %c0_i32_103 = arith.constant 0 : i32
    %269 = arith.cmpi ne, %268, %c0_i32_103 : i32
    scf.if %269 {
      %c0_104 = arith.constant 0 : index
      %c0_105 = arith.constant 0 : index
      %270 = vector.load %arg26[%c0_104, %c0_105] : memref<32x128xbf16, #tpu.memory_space<vmem>>, vector<32x128xbf16>
      %c0_106 = arith.constant 0 : index
      %c0_107 = arith.constant 0 : index
      %271 = vector.load %arg27[%c0_106, %c0_107] : memref<1x128xf32, #tpu.memory_space<vmem>>, vector<1x128xf32>
      %272 = arith.truncf %265 : vector<8x32xf32> to vector<8x32xbf16>
      %cst_108 = arith.constant dense<0.000000e+00> : vector<8x128xf32>
      %273 = tpu.matmul %272, %270, %cst_108 {dimension_numbers = #tpu.dot_dimension_numbers<[1], [0], [0], [1], [0, 0, 1, 1], [], []>} : vector<8x32xbf16>, vector<32x128xbf16>, vector<8x128xf32> -> vector<8x128xf32>
      %274 = vector.broadcast %271 : vector<1x128xf32> to vector<8x128xf32>
      %275 = arith.addf %273, %274 : vector<8x128xf32>
      %cst_109 = arith.constant dense<0xFF800000> : vector<8xf32>
      %276 = vector.multi_reduction <maximumf>, %275, %cst_109 [1] : vector<8x128xf32> to vector<8xf32>
      %277 = vector.shape_cast %276 : vector<8xf32> to vector<8x1xf32>
      %278 = vector.broadcast %277 : vector<8x1xf32> to vector<8x128xf32>
      %279 = arith.subf %275, %278 : vector<8x128xf32>
      %280 = math.exp %279 : vector<8x128xf32>
      %cst_110 = arith.constant dense<0.000000e+00> : vector<8xf32>
      %281 = vector.multi_reduction <add>, %280, %cst_110 [1] : vector<8x128xf32> to vector<8xf32>
      %282 = vector.shape_cast %281 : vector<8xf32> to vector<8x1xf32>
      %283 = math.log %282 : vector<8x1xf32>
      %284 = vector.broadcast %283 : vector<8x1xf32> to vector<8x128xf32>
      %285 = arith.subf %279, %284 : vector<8x128xf32>
      %c0_111 = arith.constant 0 : index
      %c0_112 = arith.constant 0 : index
      %c0_113 = arith.constant 0 : index
      %286 = vector.load %arg28[%c0_111, %c0_112, %c0_113] : memref<1x8x128xf32, #tpu.memory_space<vmem>>, vector<1x8x128xf32>
      %287 = vector.shape_cast %286 : vector<1x8x128xf32> to vector<8x128xf32>
      %288 = vector.shape_cast %285 : vector<8x128xf32> to vector<1x8x128xf32>
      tpu.vector_store %arg28[%c0_111, %c0_112, %c0_113], %288 {strides = array<i32>} : memref<1x8x128xf32, #tpu.memory_space<vmem>>, vector<1x8x128xf32>,
    } else {
    }
    return
  }
  func.func @transform_0(%arg0: i32, %arg1: i32) -> (i32, i32, i32) {
    %c0_i32 = arith.constant 0 : i32
    %c0_i32_0 = arith.constant 0 : i32
    %c0_i32_1 = arith.constant 0 : i32
    return %arg0, %c0_i32, %c0_i32_0 : i32, i32, i32
  }
  func.func @transform_1(%arg0: i32, %arg1: i32) -> (i32, i32, i32) {
    %c0_i32 = arith.constant 0 : i32
    %c0_i32_0 = arith.constant 0 : i32
    %c0_i32_1 = arith.constant 0 : i32
    return %arg0, %c0_i32, %c0_i32_0 : i32, i32, i32
  }
  func.func @transform_2(%arg0: i32, %arg1: i32) -> (i32, i32) {
    %c0_i32 = arith.constant 0 : i32
    %c0_i32_0 = arith.constant 0 : i32
    %c0_i32_1 = arith.constant 0 : i32
    return %c0_i32, %c0_i32_0 : i32, i32
  }
  func.func @transform_3(%arg0: i32, %arg1: i32) -> (i32, i32) {
    %c0_i32 = arith.constant 0 : i32
    %c0_i32_0 = arith.constant 0 : i32
    %c0_i32_1 = arith.constant 0 : i32
    return %c0_i32, %c0_i32_0 : i32, i32
  }
  func.func @transform_4(%arg0: i32, %arg1: i32) -> (i32, i32, i32) {
    %c0_i32 = arith.constant 0 : i32
    %c0_i32_0 = arith.constant 0 : i32
    %c0_i32_1 = arith.constant 0 : i32
    return %arg1, %c0_i32, %c0_i32_0 : i32, i32, i32
  }
  func.func @transform_5(%arg0: i32, %arg1: i32) -> (i32, i32, i32) {
    %c0_i32 = arith.constant 0 : i32
    %c0_i32_0 = arith.constant 0 : i32
    %c0_i32_1 = arith.constant 0 : i32
    return %arg1, %c0_i32, %c0_i32_0 : i32, i32, i32
  }
  func.func @transform_6(%arg0: i32, %arg1: i32) -> (i32, i32, i32) {
    %c0_i32 = arith.constant 0 : i32
    %c0_i32_0 = arith.constant 0 : i32
    %c0_i32_1 = arith.constant 0 : i32
    return %arg1, %c0_i32, %c0_i32_0 : i32, i32, i32
  }
  func.func @transform_7(%arg0: i32, %arg1: i32) -> (i32, i32, i32) {
    %c0_i32 = arith.constant 0 : i32
    %c0_i32_0 = arith.constant 0 : i32
    %c0_i32_1 = arith.constant 0 : i32
    return %arg1, %c0_i32, %c0_i32_0 : i32, i32, i32
  }
  func.func @transform_8(%arg0: i32, %arg1: i32) -> (i32, i32, i32) {
    %c0_i32 = arith.constant 0 : i32
    %c0_i32_0 = arith.constant 0 : i32
    %c0_i32_1 = arith.constant 0 : i32
    return %arg1, %c0_i32, %c0_i32_0 : i32, i32, i32
  }
  func.func @transform_9(%arg0: i32, %arg1: i32) -> (i32, i32, i32) {
    %c0_i32 = arith.constant 0 : i32
    %c0_i32_0 = arith.constant 0 : i32
    %c0_i32_1 = arith.constant 0 : i32
    return %arg1, %c0_i32, %c0_i32_0 : i32, i32, i32
  }
  func.func @transform_10(%arg0: i32, %arg1: i32) -> (i32, i32, i32) {
    %c0_i32 = arith.constant 0 : i32
    %c0_i32_0 = arith.constant 0 : i32
    %c0_i32_1 = arith.constant 0 : i32
    return %arg1, %c0_i32, %c0_i32_0 : i32, i32, i32
  }
  func.func @transform_11(%arg0: i32, %arg1: i32) -> (i32, i32, i32) {
    %c0_i32 = arith.constant 0 : i32
    %c0_i32_0 = arith.constant 0 : i32
    %c0_i32_1 = arith.constant 0 : i32
    return %arg1, %c0_i32, %c0_i32_0 : i32, i32, i32
  }
  func.func @transform_12(%arg0: i32, %arg1: i32) -> (i32, i32, i32) {
    %c0_i32 = arith.constant 0 : i32
    %c0_i32_0 = arith.constant 0 : i32
    %c0_i32_1 = arith.constant 0 : i32
    return %arg1, %c0_i32, %c0_i32_0 : i32, i32, i32
  }
  func.func @transform_13(%arg0: i32, %arg1: i32) -> (i32, i32, i32) {
    %c0_i32 = arith.constant 0 : i32
    %c0_i32_0 = arith.constant 0 : i32
    %c0_i32_1 = arith.constant 0 : i32
    return %arg1, %c0_i32, %c0_i32_0 : i32, i32, i32
  }
  func.func @transform_14(%arg0: i32, %arg1: i32) -> (i32, i32, i32) {
    %c0_i32 = arith.constant 0 : i32
    %c0_i32_0 = arith.constant 0 : i32
    %c0_i32_1 = arith.constant 0 : i32
    return %arg1, %c0_i32, %c0_i32_0 : i32, i32, i32
  }
  func.func @transform_15(%arg0: i32, %arg1: i32) -> (i32, i32, i32) {
    %c0_i32 = arith.constant 0 : i32
    %c0_i32_0 = arith.constant 0 : i32
    %c0_i32_1 = arith.constant 0 : i32
    return %arg1, %c0_i32, %c0_i32_0 : i32, i32, i32
  }
  func.func @transform_16(%arg0: i32, %arg1: i32) -> (i32, i32, i32) {
    %c0_i32 = arith.constant 0 : i32
    %c0_i32_0 = arith.constant 0 : i32
    %c0_i32_1 = arith.constant 0 : i32
    return %arg1, %c0_i32, %c0_i32_0 : i32, i32, i32
  }
  func.func @transform_17(%arg0: i32, %arg1: i32) -> (i32, i32, i32) {
    %c0_i32 = arith.constant 0 : i32
    %c0_i32_0 = arith.constant 0 : i32
    %c0_i32_1 = arith.constant 0 : i32
    return %arg1, %c0_i32, %c0_i32_0 : i32, i32, i32
  }
  func.func @transform_18(%arg0: i32, %arg1: i32) -> (i32, i32, i32) {
    %c0_i32 = arith.constant 0 : i32
    %c0_i32_0 = arith.constant 0 : i32
    %c0_i32_1 = arith.constant 0 : i32
    return %arg1, %c0_i32, %c0_i32_0 : i32, i32, i32
  }
  func.func @transform_19(%arg0: i32, %arg1: i32) -> (i32, i32, i32) {
    %c0_i32 = arith.constant 0 : i32
    %c0_i32_0 = arith.constant 0 : i32
    %c0_i32_1 = arith.constant 0 : i32
    return %arg1, %c0_i32, %c0_i32_0 : i32, i32, i32
  }
  func.func @transform_20(%arg0: i32, %arg1: i32) -> (i32, i32, i32) {
    %c0_i32 = arith.constant 0 : i32
    %c0_i32_0 = arith.constant 0 : i32
    %c0_i32_1 = arith.constant 0 : i32
    return %arg1, %c0_i32, %c0_i32_0 : i32, i32, i32
  }
  func.func @transform_21(%arg0: i32, %arg1: i32) -> (i32, i32, i32) {
    %c0_i32 = arith.constant 0 : i32
    %c0_i32_0 = arith.constant 0 : i32
    %c0_i32_1 = arith.constant 0 : i32
    return %arg1, %c0_i32, %c0_i32_0 : i32, i32, i32
  }
  func.func @transform_22(%arg0: i32, %arg1: i32) -> (i32, i32, i32) {
    %c0_i32 = arith.constant 0 : i32
    %c0_i32_0 = arith.constant 0 : i32
    %c0_i32_1 = arith.constant 0 : i32
    return %arg1, %c0_i32, %c0_i32_0 : i32, i32, i32
  }
  func.func @transform_23(%arg0: i32, %arg1: i32) -> (i32, i32, i32) {
    %c0_i32 = arith.constant 0 : i32
    %c0_i32_0 = arith.constant 0 : i32
    %c0_i32_1 = arith.constant 0 : i32
    return %arg1, %c0_i32, %c0_i32_0 : i32, i32, i32
  }
  func.func @transform_24(%arg0: i32, %arg1: i32) -> (i32, i32) {
    %c0_i32 = arith.constant 0 : i32
    %c0_i32_0 = arith.constant 0 : i32
    %c0_i32_1 = arith.constant 0 : i32
    return %c0_i32, %c0_i32_0 : i32, i32
  }
  func.func @transform_25(%arg0: i32, %arg1: i32) -> (i32, i32) {
    %c0_i32 = arith.constant 0 : i32
    %c0_i32_0 = arith.constant 0 : i32
    %c0_i32_1 = arith.constant 0 : i32
    return %c0_i32, %c0_i32_0 : i32, i32
  }
  func.func @transform_26(%arg0: i32, %arg1: i32) -> (i32, i32, i32) {
    %c0_i32 = arith.constant 0 : i32
    %c0_i32_0 = arith.constant 0 : i32
    %c0_i32_1 = arith.constant 0 : i32
    return %arg0, %c0_i32, %c0_i32_0 : i32, i32, i32
  }
}

</mosaic_0001>

<llo_original>
// kernel: decoder_forward.1
$region0: #{decoder_forward.1}
  #allocation0 [shape = 'u32[]', space=smem, size = 0x4, offset = 0x4, fixed_abs, tag = 'smem constant byte address 0x4 - core index']
  #allocation1 [shape = 'u32[72,128]{1,0:T(1,128)}', space=vmem, size = 0x9000, scoped, tag = 'internal scratch']
  #allocation2 [shape = 'f32[8,32]{1,0:T(8,128)}', space=vmem, size = 0x1000, scoped, tag = 'scratch operand']
  %s0 = inlined_call_operand.vmem [shape: f32[2,8,32], index: 0, kind: input, shape index: {}]
  %s1 = inlined_call_operand.vmem [shape: f32[2,8,32], index: 1, kind: input, shape index: {}]
  %s2 = inlined_call_operand.vmem [shape: f32[8,8], index: 2, kind: input, shape index: {}]
  %s3 = inlined_call_operand.vmem [shape: f32[8,8], index: 3, kind: input, shape index: {}]
  %s4 = inlined_call_operand.vmem [shape: bf16[2,32,96], index: 4, kind: input, shape index: {}]
  %s5 = inlined_call_operand.vmem [shape: f32[2,1,96], index: 5, kind: input, shape index: {}]
  %s6 = inlined_call_operand.vmem [shape: bf16[2,32,32], index: 6, kind: input, shape index: {}]
  %s7 = inlined_call_operand.vmem [shape: f32[2,1,32], index: 7, kind: input, shape index: {}]
  %s8 = inlined_call_operand.vmem [shape: bf16[2,32,32], index: 8, kind: input, shape index: {}]
  %s9 = inlined_call_operand.vmem [shape: f32[2,1,32], index: 9, kind: input, shape index: {}]
  %s10 = inlined_call_operand.vmem [shape: bf16[2,32,64], index: 10, kind: input, shape index: {}]
  %s11 = inlined_call_operand.vmem [shape: f32[2,1,64], index: 11, kind: input, shape index: {}]
  %s12 = inlined_call_operand.vmem [shape: bf16[2,32,32], index: 12, kind: input, shape index: {}]
  %s13 = inlined_call_operand.vmem [shape: f32[2,1,32], index: 13, kind: input, shape index: {}]
  %s14 = inlined_call_operand.vmem [shape: f32[2,1,32], index: 14, kind: input, shape index: {}]
  %s15 = inlined_call_operand.vmem [shape: f32[2,1,32], index: 15, kind: input, shape index: {}]
  %s16 = inlined_call_operand.vmem [shape: f32[2,1,32], index: 16, kind: input, shape index: {}]
  %s17 = inlined_call_operand.vmem [shape: f32[2,1,32], index: 17, kind: input, shape index: {}]
  %s18 = inlined_call_operand.vmem [shape: f32[2,1,32], index: 18, kind: input, shape index: {}]
  %s19 = inlined_call_operand.vmem [shape: f32[2,1,32], index: 19, kind: input, shape index: {}]
  %s20 = inlined_call_operand.vmem [shape: bf16[2,32,64], index: 20, kind: input, shape index: {}]
  %s21 = inlined_call_operand.vmem [shape: f32[2,1,64], index: 21, kind: input, shape index: {}]
  %s22 = inlined_call_operand.vmem [shape: bf16[2,64,32], index: 22, kind: input, shape index: {}]
  %s23 = inlined_call_operand.vmem [shape: f32[2,1,32], index: 23, kind: input, shape index: {}]
  %s24 = inlined_call_operand.vmem [shape: bf16[32,128], index: 24, kind: input, shape index: {}]
  %s25 = inlined_call_operand.vmem [shape: f32[1,128], index: 25, kind: input, shape index: {}]
  %s26 = inlined_call_operand.vmem [shape: f32[2,8,128], index: 26, kind: output, shape index: {}]
  %s27 = sld [smem:[#allocation0]]
  $region145: #{decoder_forward.1} parent=0
    _
  %s29 = ssub.s32 1, %s27
  %s30 = scalar_select 0, %s29, %s27
  loop: start=0, step=1, limit=6
  $region2: #{decoder_forward.1} parent=0 // loop_pre_header
    _
  $region3: #{decoder_forward.1} parent=0 // loop_header
    %s32 = sphi 0, %s36
    %p33 = scmp.ge.s32.totalorder %s32, 6
    %s39 = sphi 0, %s51
    %s40 = sphi 0, %s47
    %s41 = sphi 0, %s39
    %s42 = sphi 0, %s40
    %s43 = sphi 0, %s41
    %s44 = sphi 0, %s42
    %s54 = sphi 0, %s56
    %s57 = sphi 0, %s54
    %s58 = sphi 0, %s57
    %s74 = sphi 0, %s58
    %s80 = sphi 0, %s82
    %s83 = sphi 0, %s80
    %s84 = sphi 0, %s83
    %s100 = sphi 0, %s84
    %s104 = sphi 0, %s104
    %s106 = sphi 0, %s104
    %s107 = sphi 0, %s106
    %s121 = sphi 0, %s107
    %s125 = sphi 0, %s125
    %s127 = sphi 0, %s125
    %s128 = sphi 0, %s127
    %s142 = sphi 0, %s128
    %s148 = sphi 0, %s150
    %s151 = sphi 0, %s148
    %s152 = sphi 0, %s151
    %s168 = sphi 0, %s152
    %s174 = sphi 0, %s176
    %s177 = sphi 0, %s174
    %s178 = sphi 0, %s177
    %s194 = sphi 0, %s178
    %s200 = sphi 0, %s202
    %s203 = sphi 0, %s200
    %s204 = sphi 0, %s203
    %s220 = sphi 0, %s204
    %s226 = sphi 0, %s228
    %s229 = sphi 0, %s226
    %s230 = sphi 0, %s229
    %s246 = sphi 0, %s230
    %s252 = sphi 0, %s254
    %s255 = sphi 0, %s252
    %s256 = sphi 0, %s255
    %s272 = sphi 0, %s256
    %s278 = sphi 0, %s280
    %s281 = sphi 0, %s278
    %s282 = sphi 0, %s281
    %s298 = sphi 0, %s282
    %s304 = sphi 0, %s306
    %s307 = sphi 0, %s304
    %s308 = sphi 0, %s307
    %s324 = sphi 0, %s308
    %s330 = sphi 0, %s332
    %s333 = sphi 0, %s330
    %s334 = sphi 0, %s333
    %s350 = sphi 0, %s334
    %s356 = sphi 0, %s358
    %s359 = sphi 0, %s356
    %s360 = sphi 0, %s359
    %s376 = sphi 0, %s360
    %s382 = sphi 0, %s384
    %s385 = sphi 0, %s382
    %s386 = sphi 0, %s385
    %s402 = sphi 0, %s386
    %s408 = sphi 0, %s410
    %s411 = sphi 0, %s408
    %s412 = sphi 0, %s411
    %s428 = sphi 0, %s412
    %s434 = sphi 0, %s436
    %s437 = sphi 0, %s434
    %s438 = sphi 0, %s437
    %s454 = sphi 0, %s438
    %s460 = sphi 0, %s462
    %s463 = sphi 0, %s460
    %s464 = sphi 0, %s463
    %s480 = sphi 0, %s464
    %s486 = sphi 0, %s488
    %s489 = sphi 0, %s486
    %s490 = sphi 0, %s489
    %s506 = sphi 0, %s490
    %s512 = sphi 0, %s514
    %s515 = sphi 0, %s512
    %s516 = sphi 0, %s515
    %s532 = sphi 0, %s516
    %s538 = sphi 0, %s540
    %s541 = sphi 0, %s538
    %s542 = sphi 0, %s541
    %s558 = sphi 0, %s542
    %s564 = sphi 0, %s566
    %s567 = sphi 0, %s564
    %s568 = sphi 0, %s567
    %s584 = sphi 0, %s568
    %s590 = sphi 0, %s592
    %s593 = sphi 0, %s590
    %s594 = sphi 0, %s593
    %s610 = sphi 0, %s594
    %s616 = sphi 0, %s618
    %s619 = sphi 0, %s616
    %s620 = sphi 0, %s619
    %s636 = sphi 0, %s620
    %s642 = sphi 0, %s644
    %s645 = sphi 0, %s642
    %s646 = sphi 0, %s645
    %s662 = sphi 0, %s646
    %s666 = sphi 0, %s666
    %s668 = sphi 0, %s666
    %s669 = sphi 0, %s668
    %s683 = sphi 0, %s669
    %s687 = sphi 0, %s687
    %s689 = sphi 0, %s687
    %s690 = sphi 0, %s689
    %s704 = sphi 0, %s690
    %s710 = sphi 0, %s712
    %s713 = sphi 0, %s710
    %s714 = sphi 0, %s713
    %s730 = sphi 0, %s714
  $region4: #{decoder_forward.1} parent=0 // loop_header_branch
    %35 = sbr.rel (%p33) target = $region8
  $region5: #{decoder_forward.1} parent=0 // loop_body
    %s37 = ssub.s32 %s32, 1
    %s38 = ssub.s32 %s32, 2
    %s45 = sadd.s32 1, %s40
    %p46 = scmp.ge.s32.totalorder %s45, 2
    %s47 = scalar_select %p46, 0, %s45
    %s48 = sadd.s32 1, %s39
    %s49 = scalar_select %p46, %s48, %s39
    %p50 = scmp.ge.s32.totalorder %s49, 2
    %s51 = scalar_select %p50, 0, %s49
    %s52 = ssub.s32 %s39, %s51
    %p53 = scmp.eq.s32.totalorder %s52, 0
    %s55 = sadd.s32 %s54, 1
    %s56 = scalar_select %p53, %s54, %s55
    %p59 = pneg %p53
    %p60 = scmp.eq.s32.totalorder %s32, 3
    %p61 = por %p59, %p60
    %p62 = scmp.ne.s32.totalorder %s54, %s57
    %p63 = scmp.eq.s32.totalorder %s32, 0
    %p64 = por %p62, %p63
    %p65 = scmp.ne.s32.totalorder %s54, %s57
    %p66 = scmp.eq.s32.totalorder %s37, 3
    %p67 = por %p65, %p66
    %p68 = scmp.ne.s32.totalorder %s57, %s58
    %p69 = scmp.eq.s32.totalorder %s37, 0
    %p70 = por %p68, %p69
    %p71 = scmp.ne.s32.totalorder %s57, %s58
    %p72 = scmp.eq.s32.totalorder %s38, 3
    %p73 = por %p71, %p72
    %p75 = scmp.ne.s32.totalorder %s58, %s74
    %p76 = scmp.eq.s32.totalorder %s38, 0
    %p77 = por %p75, %p76
    %s78 = ssub.s32 %s39, %s51
    %p79 = scmp.eq.s32.totalorder %s78, 0
    %s81 = sadd.s32 %s80, 1
    %s82 = scalar_select %p79, %s80, %s81
    %p85 = pneg %p79
    %p86 = scmp.eq.s32.totalorder %s32, 3
    %p87 = por %p85, %p86
    %p88 = scmp.ne.s32.totalorder %s80, %s83
    %p89 = scmp.eq.s32.totalorder %s32, 0
    %p90 = por %p88, %p89
    %p91 = scmp.ne.s32.totalorder %s80, %s83
    %p92 = scmp.eq.s32.totalorder %s37, 3
    %p93 = por %p91, %p92
    %p94 = scmp.ne.s32.totalorder %s83, %s84
    %p95 = scmp.eq.s32.totalorder %s37, 0
    %p96 = por %p94, %p95
    %p97 = scmp.ne.s32.totalorder %s83, %s84
    %p98 = scmp.eq.s32.totalorder %s38, 3
    %p99 = por %p97, %p98
    %p101 = scmp.ne.s32.totalorder %s84, %s100
    %p102 = scmp.eq.s32.totalorder %s38, 0
    %p103 = por %p101, %p102
    %s105 = sadd.s32 %s104, 1
    %p108 = scmp.eq.s32.totalorder %s32, 3
    %p109 = scmp.ne.s32.totalorder %s104, %s106
    %p110 = scmp.eq.s32.totalorder %s32, 0
    %p111 = por %p109, %p110
    %p112 = scmp.ne.s32.totalorder %s104, %s106
    %p113 = scmp.eq.s32.totalorder %s37, 3
    %p114 = por %p112, %p113
    %p115 = scmp.ne.s32.totalorder %s106, %s107
    %p116 = scmp.eq.s32.totalorder %s37, 0
    %p117 = por %p115, %p116
    %p118 = scmp.ne.s32.totalorder %s106, %s107
    %p119 = scmp.eq.s32.totalorder %s38, 3
    %p120 = por %p118, %p119
    %p122 = scmp.ne.s32.totalorder %s107, %s121
    %p123 = scmp.eq.s32.totalorder %s38, 0
    %p124 = por %p122, %p123
    %s126 = sadd.s32 %s125, 1
    %p129 = scmp.eq.s32.totalorder %s32, 3
    %p130 = scmp.ne.s32.totalorder %s125, %s127
    %p131 = scmp.eq.s32.totalorder %s32, 0
    %p132 = por %p130, %p131
    %p133 = scmp.ne.s32.totalorder %s125, %s127
    %p134 = scmp.eq.s32.totalorder %s37, 3
    %p135 = por %p133, %p134
    %p136 = scmp.ne.s32.totalorder %s127, %s128
    %p137 = scmp.eq.s32.totalorder %s37, 0
    %p138 = por %p136, %p137
    %p139 = scmp.ne.s32.totalorder %s127, %s128
    %p140 = scmp.eq.s32.totalorder %s38, 3
    %p141 = por %p139, %p140
    %p143 = scmp.ne.s32.totalorder %s128, %s142
    %p144 = scmp.eq.s32.totalorder %s38, 0
    %p145 = por %p143, %p144
    %s146 = ssub.s32 %s40, %s47
    %p147 = scmp.eq.s32.totalorder %s146, 0
    %s149 = sadd.s32 %s148, 1
    %s150 = scalar_select %p147, %s148, %s149
    %p153 = pneg %p147
    %p154 = scmp.eq.s32.totalorder %s32, 3
    %p155 = por %p153, %p154
    %p156 = scmp.ne.s32.totalorder %s148, %s151
    %p157 = scmp.eq.s32.totalorder %s32, 0
    %p158 = por %p156, %p157
    %p159 = scmp.ne.s32.totalorder %s148, %s151
    %p160 = scmp.eq.s32.totalorder %s37, 3
    %p161 = por %p159, %p160
    %p162 = scmp.ne.s32.totalorder %s151, %s152
    %p163 = scmp.eq.s32.totalorder %s37, 0
    %p164 = por %p162, %p163
    %p165 = scmp.ne.s32.totalorder %s151, %s152
    %p166 = scmp.eq.s32.totalorder %s38, 3
    %p167 = por %p165, %p166
    %p169 = scmp.ne.s32.totalorder %s152, %s168
    %p170 = scmp.eq.s32.totalorder %s38, 0
    %p171 = por %p169, %p170
    %s172 = ssub.s32 %s40, %s47
    %p173 = scmp.eq.s32.totalorder %s172, 0
    %s175 = sadd.s32 %s174, 1
    %s176 = scalar_select %p173, %s174, %s175
    %p179 = pneg %p173
    %p180 = scmp.eq.s32.totalorder %s32, 3
    %p181 = por %p179, %p180
    %p182 = scmp.ne.s32.totalorder %s174, %s177
    %p183 = scmp.eq.s32.totalorder %s32, 0
    %p184 = por %p182, %p183
    %p185 = scmp.ne.s32.totalorder %s174, %s177
    %p186 = scmp.eq.s32.totalorder %s37, 3
    %p187 = por %p185, %p186
    %p188 = scmp.ne.s32.totalorder %s177, %s178
    %p189 = scmp.eq.s32.totalorder %s37, 0
    %p190 = por %p188, %p189
    %p191 = scmp.ne.s32.totalorder %s177, %s178
    %p192 = scmp.eq.s32.totalorder %s38, 3
    %p193 = por %p191, %p192
    %p195 = scmp.ne.s32.totalorder %s178, %s194
    %p196 = scmp.eq.s32.totalorder %s38, 0
    %p197 = por %p195, %p196
    %s198 = ssub.s32 %s40, %s47
    %p199 = scmp.eq.s32.totalorder %s198, 0
    %s201 = sadd.s32 %s200, 1
    %s202 = scalar_select %p199, %s200, %s201
    %p205 = pneg %p199
    %p206 = scmp.eq.s32.totalorder %s32, 3
    %p207 = por %p205, %p206
    %p208 = scmp.ne.s32.totalorder %s200, %s203
    %p209 = scmp.eq.s32.totalorder %s32, 0
    %p210 = por %p208, %p209
    %p211 = scmp.ne.s32.totalorder %s200, %s203
    %p212 = scmp.eq.s32.totalorder %s37, 3
    %p213 = por %p211, %p212
    %p214 = scmp.ne.s32.totalorder %s203, %s204
    %p215 = scmp.eq.s32.totalorder %s37, 0
    %p216 = por %p214, %p215
    %p217 = scmp.ne.s32.totalorder %s203, %s204
    %p218 = scmp.eq.s32.totalorder %s38, 3
    %p219 = por %p217, %p218
    %p221 = scmp.ne.s32.totalorder %s204, %s220
    %p222 = scmp.eq.s32.totalorder %s38, 0
    %p223 = por %p221, %p222
    %s224 = ssub.s32 %s40, %s47
    %p225 = scmp.eq.s32.totalorder %s224, 0
    %s227 = sadd.s32 %s226, 1
    %s228 = scalar_select %p225, %s226, %s227
    %p231 = pneg %p225
    %p232 = scmp.eq.s32.totalorder %s32, 3
    %p233 = por %p231, %p232
    %p234 = scmp.ne.s32.totalorder %s226, %s229
    %p235 = scmp.eq.s32.totalorder %s32, 0
    %p236 = por %p234, %p235
    %p237 = scmp.ne.s32.totalorder %s226, %s229
    %p238 = scmp.eq.s32.totalorder %s37, 3
    %p239 = por %p237, %p238
    %p240 = scmp.ne.s32.totalorder %s229, %s230
    %p241 = scmp.eq.s32.totalorder %s37, 0
    %p242 = por %p240, %p241
    %p243 = scmp.ne.s32.totalorder %s229, %s230
    %p244 = scmp.eq.s32.totalorder %s38, 3
    %p245 = por %p243, %p244
    %p247 = scmp.ne.s32.totalorder %s230, %s246
    %p248 = scmp.eq.s32.totalorder %s38, 0
    %p249 = por %p247, %p248
    %s250 = ssub.s32 %s40, %s47
    %p251 = scmp.eq.s32.totalorder %s250, 0
    %s253 = sadd.s32 %s252, 1
    %s254 = scalar_select %p251, %s252, %s253
    %p257 = pneg %p251
    %p258 = scmp.eq.s32.totalorder %s32, 3
    %p259 = por %p257, %p258
    %p260 = scmp.ne.s32.totalorder %s252, %s255
    %p261 = scmp.eq.s32.totalorder %s32, 0
    %p262 = por %p260, %p261
    %p263 = scmp.ne.s32.totalorder %s252, %s255
    %p264 = scmp.eq.s32.totalorder %s37, 3
    %p265 = por %p263, %p264
    %p266 = scmp.ne.s32.totalorder %s255, %s256
    %p267 = scmp.eq.s32.totalorder %s37, 0
    %p268 = por %p266, %p267
    %p269 = scmp.ne.s32.totalorder %s255, %s256
    %p270 = scmp.eq.s32.totalorder %s38, 3
    %p271 = por %p269, %p270
    %p273 = scmp.ne.s32.totalorder %s256, %s272
    %p274 = scmp.eq.s32.totalorder %s38, 0
    %p275 = por %p273, %p274
    %s276 = ssub.s32 %s40, %s47
    %p277 = scmp.eq.s32.totalorder %s276, 0
    %s279 = sadd.s32 %s278, 1
    %s280 = scalar_select %p277, %s278, %s279
    %p283 = pneg %p277
    %p284 = scmp.eq.s32.totalorder %s32, 3
    %p285 = por %p283, %p284
    %p286 = scmp.ne.s32.totalorder %s278, %s281
    %p287 = scmp.eq.s32.totalorder %s32, 0
    %p288 = por %p286, %p287
    %p289 = scmp.ne.s32.totalorder %s278, %s281
    %p290 = scmp.eq.s32.totalorder %s37, 3
    %p291 = por %p289, %p290
    %p292 = scmp.ne.s32.totalorder %s281, %s282
    %p293 = scmp.eq.s32.totalorder %s37, 0
    %p294 = por %p292, %p293
    %p295 = scmp.ne.s32.totalorder %s281, %s282
    %p296 = scmp.eq.s32.totalorder %s38, 3
    %p297 = por %p295, %p296
    %p299 = scmp.ne.s32.totalorder %s282, %s298
    %p300 = scmp.eq.s32.totalorder %s38, 0
    %p301 = por %p299, %p300
    %s302 = ssub.s32 %s40, %s47
    %p303 = scmp.eq.s32.totalorder %s302, 0
    %s305 = sadd.s32 %s304, 1
    %s306 = scalar_select %p303, %s304, %s305
    %p309 = pneg %p303
    %p310 = scmp.eq.s32.totalorder %s32, 3
    %p311 = por %p309, %p310
    %p312 = scmp.ne.s32.totalorder %s304, %s307
    %p313 = scmp.eq.s32.totalorder %s32, 0
    %p314 = por %p312, %p313
    %p315 = scmp.ne.s32.totalorder %s304, %s307
    %p316 = scmp.eq.s32.totalorder %s37, 3
    %p317 = por %p315, %p316
    %p318 = scmp.ne.s32.totalorder %s307, %s308
    %p319 = scmp.eq.s32.totalorder %s37, 0
    %p320 = por %p318, %p319
    %p321 = scmp.ne.s32.totalorder %s307, %s308
    %p322 = scmp.eq.s32.totalorder %s38, 3
    %p323 = por %p321, %p322
    %p325 = scmp.ne.s32.totalorder %s308, %s324
    %p326 = scmp.eq.s32.totalorder %s38, 0
    %p327 = por %p325, %p326
    %s328 = ssub.s32 %s40, %s47
    %p329 = scmp.eq.s32.totalorder %s328, 0
    %s331 = sadd.s32 %s330, 1
    %s332 = scalar_select %p329, %s330, %s331
    %p335 = pneg %p329
    %p336 = scmp.eq.s32.totalorder %s32, 3
    %p337 = por %p335, %p336
    %p338 = scmp.ne.s32.totalorder %s330, %s333
    %p339 = scmp.eq.s32.totalorder %s32, 0
    %p340 = por %p338, %p339
    %p341 = scmp.ne.s32.totalorder %s330, %s333
    %p342 = scmp.eq.s32.totalorder %s37, 3
    %p343 = por %p341, %p342
    %p344 = scmp.ne.s32.totalorder %s333, %s334
    %p345 = scmp.eq.s32.totalorder %s37, 0
    %p346 = por %p344, %p345
    %p347 = scmp.ne.s32.totalorder %s333, %s334
    %p348 = scmp.eq.s32.totalorder %s38, 3
    %p349 = por %p347, %p348
    %p351 = scmp.ne.s32.totalorder %s334, %s350
    %p352 = scmp.eq.s32.totalorder %s38, 0
    %p353 = por %p351, %p352
    %s354 = ssub.s32 %s40, %s47
    %p355 = scmp.eq.s32.totalorder %s354, 0
    %s357 = sadd.s32 %s356, 1
    %s358 = scalar_select %p355, %s356, %s357
    %p361 = pneg %p355
    %p362 = scmp.eq.s32.totalorder %s32, 3
    %p363 = por %p361, %p362
    %p364 = scmp.ne.s32.totalorder %s356, %s359
    %p365 = scmp.eq.s32.totalorder %s32, 0
    %p366 = por %p364, %p365
    %p367 = scmp.ne.s32.totalorder %s356, %s359
    %p368 = scmp.eq.s32.totalorder %s37, 3
    %p369 = por %p367, %p368
    %p370 = scmp.ne.s32.totalorder %s359, %s360
    %p371 = scmp.eq.s32.totalorder %s37, 0
    %p372 = por %p370, %p371
    %p373 = scmp.ne.s32.totalorder %s359, %s360
    %p374 = scmp.eq.s32.totalorder %s38, 3
    %p375 = por %p373, %p374
    %p377 = scmp.ne.s32.totalorder %s360, %s376
    %p378 = scmp.eq.s32.totalorder %s38, 0
    %p379 = por %p377, %p378
    %s380 = ssub.s32 %s40, %s47
    %p381 = scmp.eq.s32.totalorder %s380, 0
    %s383 = sadd.s32 %s382, 1
    %s384 = scalar_select %p381, %s382, %s383
    %p387 = pneg %p381
    %p388 = scmp.eq.s32.totalorder %s32, 3
    %p389 = por %p387, %p388
    %p390 = scmp.ne.s32.totalorder %s382, %s385
    %p391 = scmp.eq.s32.totalorder %s32, 0
    %p392 = por %p390, %p391
    %p393 = scmp.ne.s32.totalorder %s382, %s385
    %p394 = scmp.eq.s32.totalorder %s37, 3
    %p395 = por %p393, %p394
    %p396 = scmp.ne.s32.totalorder %s385, %s386
    %p397 = scmp.eq.s32.totalorder %s37, 0
    %p398 = por %p396, %p397
    %p399 = scmp.ne.s32.totalorder %s385, %s386
    %p400 = scmp.eq.s32.totalorder %s38, 3
    %p401 = por %p399, %p400
    %p403 = scmp.ne.s32.totalorder %s386, %s402
    %p404 = scmp.eq.s32.totalorder %s38, 0
    %p405 = por %p403, %p404
    %s406 = ssub.s32 %s40, %s47
    %p407 = scmp.eq.s32.totalorder %s406, 0
    %s409 = sadd.s32 %s408, 1
    %s410 = scalar_select %p407, %s408, %s409
    %p413 = pneg %p407
    %p414 = scmp.eq.s32.totalorder %s32, 3
    %p415 = por %p413, %p414
    %p416 = scmp.ne.s32.totalorder %s408, %s411
    %p417 = scmp.eq.s32.totalorder %s32, 0
    %p418 = por %p416, %p417
    %p419 = scmp.ne.s32.totalorder %s408, %s411
    %p420 = scmp.eq.s32.totalorder %s37, 3
    %p421 = por %p419, %p420
    %p422 = scmp.ne.s32.totalorder %s411, %s412
    %p423 = scmp.eq.s32.totalorder %s37, 0
    %p424 = por %p422, %p423
    %p425 = scmp.ne.s32.totalorder %s411, %s412
    %p426 = scmp.eq.s32.totalorder %s38, 3
    %p427 = por %p425, %p426
    %p429 = scmp.ne.s32.totalorder %s412, %s428
    %p430 = scmp.eq.s32.totalorder %s38, 0
    %p431 = por %p429, %p430
    %s432 = ssub.s32 %s40, %s47
    %p433 = scmp.eq.s32.totalorder %s432, 0
    %s435 = sadd.s32 %s434, 1
    %s436 = scalar_select %p433, %s434, %s435
    %p439 = pneg %p433
    %p440 = scmp.eq.s32.totalorder %s32, 3
    %p441 = por %p439, %p440
    %p442 = scmp.ne.s32.totalorder %s434, %s437
    %p443 = scmp.eq.s32.totalorder %s32, 0
    %p444 = por %p442, %p443
    %p445 = scmp.ne.s32.totalorder %s434, %s437
    %p446 = scmp.eq.s32.totalorder %s37, 3
    %p447 = por %p445, %p446
    %p448 = scmp.ne.s32.totalorder %s437, %s438
    %p449 = scmp.eq.s32.totalorder %s37, 0
    %p450 = por %p448, %p449
    %p451 = scmp.ne.s32.totalorder %s437, %s438
    %p452 = scmp.eq.s32.totalorder %s38, 3
    %p453 = por %p451, %p452
    %p455 = scmp.ne.s32.totalorder %s438, %s454
    %p456 = scmp.eq.s32.totalorder %s38, 0
    %p457 = por %p455, %p456
    %s458 = ssub.s32 %s40, %s47
    %p459 = scmp.eq.s32.totalorder %s458, 0
    %s461 = sadd.s32 %s460, 1
    %s462 = scalar_select %p459, %s460, %s461
    %p465 = pneg %p459
    %p466 = scmp.eq.s32.totalorder %s32, 3
    %p467 = por %p465, %p466
    %p468 = scmp.ne.s32.totalorder %s460, %s463
    %p469 = scmp.eq.s32.totalorder %s32, 0
    %p470 = por %p468, %p469
    %p471 = scmp.ne.s32.totalorder %s460, %s463
    %p472 = scmp.eq.s32.totalorder %s37, 3
    %p473 = por %p471, %p472
    %p474 = scmp.ne.s32.totalorder %s463, %s464
    %p475 = scmp.eq.s32.totalorder %s37, 0
    %p476 = por %p474, %p475
    %p477 = scmp.ne.s32.totalorder %s463, %s464
    %p478 = scmp.eq.s32.totalorder %s38, 3
    %p479 = por %p477, %p478
    %p481 = scmp.ne.s32.totalorder %s464, %s480
    %p482 = scmp.eq.s32.totalorder %s38, 0
    %p483 = por %p481, %p482
    %s484 = ssub.s32 %s40, %s47
    %p485 = scmp.eq.s32.totalorder %s484, 0
    %s487 = sadd.s32 %s486, 1
    %s488 = scalar_select %p485, %s486, %s487
    %p491 = pneg %p485
    %p492 = scmp.eq.s32.totalorder %s32, 3
    %p493 = por %p491, %p492
    %p494 = scmp.ne.s32.totalorder %s486, %s489
    %p495 = scmp.eq.s32.totalorder %s32, 0
    %p496 = por %p494, %p495
    %p497 = scmp.ne.s32.totalorder %s486, %s489
    %p498 = scmp.eq.s32.totalorder %s37, 3
    %p499 = por %p497, %p498
    %p500 = scmp.ne.s32.totalorder %s489, %s490
    %p501 = scmp.eq.s32.totalorder %s37, 0
    %p502 = por %p500, %p501
    %p503 = scmp.ne.s32.totalorder %s489, %s490
    %p504 = scmp.eq.s32.totalorder %s38, 3
    %p505 = por %p503, %p504
    %p507 = scmp.ne.s32.totalorder %s490, %s506
    %p508 = scmp.eq.s32.totalorder %s38, 0
    %p509 = por %p507, %p508
    %s510 = ssub.s32 %s40, %s47
    %p511 = scmp.eq.s32.totalorder %s510, 0
    %s513 = sadd.s32 %s512, 1
    %s514 = scalar_select %p511, %s512, %s513
    %p517 = pneg %p511
    %p518 = scmp.eq.s32.totalorder %s32, 3
    %p519 = por %p517, %p518
    %p520 = scmp.ne.s32.totalorder %s512, %s515
    %p521 = scmp.eq.s32.totalorder %s32, 0
    %p522 = por %p520, %p521
    %p523 = scmp.ne.s32.totalorder %s512, %s515
    %p524 = scmp.eq.s32.totalorder %s37, 3
    %p525 = por %p523, %p524
    %p526 = scmp.ne.s32.totalorder %s515, %s516
    %p527 = scmp.eq.s32.totalorder %s37, 0
    %p528 = por %p526, %p527
    %p529 = scmp.ne.s32.totalorder %s515, %s516
    %p530 = scmp.eq.s32.totalorder %s38, 3
    %p531 = por %p529, %p530
    %p533 = scmp.ne.s32.totalorder %s516, %s532
    %p534 = scmp.eq.s32.totalorder %s38, 0
    %p535 = por %p533, %p534
    %s536 = ssub.s32 %s40, %s47
    %p537 = scmp.eq.s32.totalorder %s536, 0
    %s539 = sadd.s32 %s538, 1
    %s540 = scalar_select %p537, %s538, %s539
    %p543 = pneg %p537
    %p544 = scmp.eq.s32.totalorder %s32, 3
    %p545 = por %p543, %p544
    %p546 = scmp.ne.s32.totalorder %s538, %s541
    %p547 = scmp.eq.s32.totalorder %s32, 0
    %p548 = por %p546, %p547
    %p549 = scmp.ne.s32.totalorder %s538, %s541
    %p550 = scmp.eq.s32.totalorder %s37, 3
    %p551 = por %p549, %p550
    %p552 = scmp.ne.s32.totalorder %s541, %s542
    %p553 = scmp.eq.s32.totalorder %s37, 0
    %p554 = por %p552, %p553
    %p555 = scmp.ne.s32.totalorder %s541, %s542
    %p556 = scmp.eq.s32.totalorder %s38, 3
    %p557 = por %p555, %p556
    %p559 = scmp.ne.s32.totalorder %s542, %s558
    %p560 = scmp.eq.s32.totalorder %s38, 0
    %p561 = por %p559, %p560
    %s562 = ssub.s32 %s40, %s47
    %p563 = scmp.eq.s32.totalorder %s562, 0
    %s565 = sadd.s32 %s564, 1
    %s566 = scalar_select %p563, %s564, %s565
    %p569 = pneg %p563
    %p570 = scmp.eq.s32.totalorder %s32, 3
    %p571 = por %p569, %p570
    %p572 = scmp.ne.s32.totalorder %s564, %s567
    %p573 = scmp.eq.s32.totalorder %s32, 0
    %p574 = por %p572, %p573
    %p575 = scmp.ne.s32.totalorder %s564, %s567
    %p576 = scmp.eq.s32.totalorder %s37, 3
    %p577 = por %p575, %p576
    %p578 = scmp.ne.s32.totalorder %s567, %s568
    %p579 = scmp.eq.s32.totalorder %s37, 0
    %p580 = por %p578, %p579
    %p581 = scmp.ne.s32.totalorder %s567, %s568
    %p582 = scmp.eq.s32.totalorder %s38, 3
    %p583 = por %p581, %p582
    %p585 = scmp.ne.s32.totalorder %s568, %s584
    %p586 = scmp.eq.s32.totalorder %s38, 0
    %p587 = por %p585, %p586
    %s588 = ssub.s32 %s40, %s47
    %p589 = scmp.eq.s32.totalorder %s588, 0
    %s591 = sadd.s32 %s590, 1
    %s592 = scalar_select %p589, %s590, %s591
    %p595 = pneg %p589
    %p596 = scmp.eq.s32.totalorder %s32, 3
    %p597 = por %p595, %p596
    %p598 = scmp.ne.s32.totalorder %s590, %s593
    %p599 = scmp.eq.s32.totalorder %s32, 0
    %p600 = por %p598, %p599
    %p601 = scmp.ne.s32.totalorder %s590, %s593
    %p602 = scmp.eq.s32.totalorder %s37, 3
    %p603 = por %p601, %p602
    %p604 = scmp.ne.s32.totalorder %s593, %s594
    %p605 = scmp.eq.s32.totalorder %s37, 0
    %p606 = por %p604, %p605
    %p607 = scmp.ne.s32.totalorder %s593, %s594
    %p608 = scmp.eq.s32.totalorder %s38, 3
    %p609 = por %p607, %p608
    %p611 = scmp.ne.s32.totalorder %s594, %s610
    %p612 = scmp.eq.s32.totalorder %s38, 0
    %p613 = por %p611, %p612
    %s614 = ssub.s32 %s40, %s47
    %p615 = scmp.eq.s32.totalorder %s614, 0
    %s617 = sadd.s32 %s616, 1
    %s618 = scalar_select %p615, %s616, %s617
    %p621 = pneg %p615
    %p622 = scmp.eq.s32.totalorder %s32, 3
    %p623 = por %p621, %p622
    %p624 = scmp.ne.s32.totalorder %s616, %s619
    %p625 = scmp.eq.s32.totalorder %s32, 0
    %p626 = por %p624, %p625
    %p627 = scmp.ne.s32.totalorder %s616, %s619
    %p628 = scmp.eq.s32.totalorder %s37, 3
    %p629 = por %p627, %p628
    %p630 = scmp.ne.s32.totalorder %s619, %s620
    %p631 = scmp.eq.s32.totalorder %s37, 0
    %p632 = por %p630, %p631
    %p633 = scmp.ne.s32.totalorder %s619, %s620
    %p634 = scmp.eq.s32.totalorder %s38, 3
    %p635 = por %p633, %p634
    %p637 = scmp.ne.s32.totalorder %s620, %s636
    %p638 = scmp.eq.s32.totalorder %s38, 0
    %p639 = por %p637, %p638
    %s640 = ssub.s32 %s40, %s47
    %p641 = scmp.eq.s32.totalorder %s640, 0
    %s643 = sadd.s32 %s642, 1
    %s644 = scalar_select %p641, %s642, %s643
    %p647 = pneg %p641
    %p648 = scmp.eq.s32.totalorder %s32, 3
    %p649 = por %p647, %p648
    %p650 = scmp.ne.s32.totalorder %s642, %s645
    %p651 = scmp.eq.s32.totalorder %s32, 0
    %p652 = por %p650, %p651
    %p653 = scmp.ne.s32.totalorder %s642, %s645
    %p654 = scmp.eq.s32.totalorder %s37, 3
    %p655 = por %p653, %p654
    %p656 = scmp.ne.s32.totalorder %s645, %s646
    %p657 = scmp.eq.s32.totalorder %s37, 0
    %p658 = por %p656, %p657
    %p659 = scmp.ne.s32.totalorder %s645, %s646
    %p660 = scmp.eq.s32.totalorder %s38, 3
    %p661 = por %p659, %p660
    %p663 = scmp.ne.s32.totalorder %s646, %s662
    %p664 = scmp.eq.s32.totalorder %s38, 0
    %p665 = por %p663, %p664
    %s667 = sadd.s32 %s666, 1
    %p670 = scmp.eq.s32.totalorder %s32, 3
    %p671 = scmp.ne.s32.totalorder %s666, %s668
    %p672 = scmp.eq.s32.totalorder %s32, 0
    %p673 = por %p671, %p672
    %p674 = scmp.ne.s32.totalorder %s666, %s668
    %p675 = scmp.eq.s32.totalorder %s37, 3
    %p676 = por %p674, %p675
    %p677 = scmp.ne.s32.totalorder %s668, %s669
    %p678 = scmp.eq.s32.totalorder %s37, 0
    %p679 = por %p677, %p678
    %p680 = scmp.ne.s32.totalorder %s668, %s669
    %p681 = scmp.eq.s32.totalorder %s38, 3
    %p682 = por %p680, %p681
    %p684 = scmp.ne.s32.totalorder %s669, %s683
    %p685 = scmp.eq.s32.totalorder %s38, 0
    %p686 = por %p684, %p685
    %s688 = sadd.s32 %s687, 1
    %p691 = scmp.eq.s32.totalorder %s32, 3
    %p692 = scmp.ne.s32.totalorder %s687, %s689
    %p693 = scmp.eq.s32.totalorder %s32, 0
    %p694 = por %p692, %p693
    %p695 = scmp.ne.s32.totalorder %s687, %s689
    %p696 = scmp.eq.s32.totalorder %s37, 3
    %p697 = por %p695, %p696
    %p698 = scmp.ne.s32.totalorder %s689, %s690
    %p699 = scmp.eq.s32.totalorder %s37, 0
    %p700 = por %p698, %p699
    %p701 = scmp.ne.s32.totalorder %s689, %s690
    %p702 = scmp.eq.s32.totalorder %s38, 3
    %p703 = por %p701, %p702
    %p705 = scmp.ne.s32.totalorder %s690, %s704
    %p706 = scmp.eq.s32.totalorder %s38, 0
    %p707 = por %p705, %p706
    %s708 = ssub.s32 %s39, %s51
    %p709 = scmp.eq.s32.totalorder %s708, 0
    %s711 = sadd.s32 %s710, 1
    %s712 = scalar_select %p709, %s710, %s711
    %p715 = pneg %p709
    %p716 = scmp.eq.s32.totalorder %s32, 3
    %p717 = por %p715, %p716
    %p718 = scmp.ne.s32.totalorder %s710, %s713
    %p719 = scmp.eq.s32.totalorder %s32, 0
    %p720 = por %p718, %p719
    %p721 = scmp.ne.s32.totalorder %s710, %s713
    %p722 = scmp.eq.s32.totalorder %s37, 3
    %p723 = por %p721, %p722
    %p724 = scmp.ne.s32.totalorder %s713, %s714
    %p725 = scmp.eq.s32.totalorder %s37, 0
    %p726 = por %p724, %p725
    %p727 = scmp.ne.s32.totalorder %s713, %s714
    %p728 = scmp.eq.s32.totalorder %s38, 3
    %p729 = por %p727, %p728
    %p731 = scmp.ne.s32.totalorder %s714, %s730
    %p732 = scmp.eq.s32.totalorder %s38, 0
    %p733 = por %p731, %p732
    %p734 = scmp.le.s32.totalorder 1, %s32
    %p735 = scmp.lt.s32.totalorder %s32, 5
    %p736 = pnand %p734, %p735
    %p737 = pneg %p736
    // Predicated region
    $region9: #{decoder_forward.1} parent=5 // pred_check
      _
    $region10: #{decoder_forward.1} parent=5 // pred_check_branch
      %739 = sbr.rel (%p736) target = $region12
    $region11: #{decoder_forward.1} parent=5 // pred_region
      %s740 = ssub.s32 %s32, 1
      // Predicated region
      $region13: #{decoder_forward.1} parent=11 // pred_check
        %p741 = pneg %p117
      $region14: #{decoder_forward.1} parent=11 // pred_check_branch
        %743 = sbr.rel (%p741) target = $region16
      $region15: #{decoder_forward.1} parent=11 // pred_region
        _
      $region16: #{decoder_forward.1} parent=11 // pred_fallthru
        _
      // Predicated region
      $region17: #{decoder_forward.1} parent=11 // pred_check
        %p744 = pneg %p138
      $region18: #{decoder_forward.1} parent=11 // pred_check_branch
        %746 = sbr.rel (%p744) target = $region20
      $region19: #{decoder_forward.1} parent=11 // pred_region
        _
      $region20: #{decoder_forward.1} parent=11 // pred_fallthru
        _
      // Predicated region
      $region21: #{decoder_forward.1} parent=11 // pred_check
        %p747 = pneg %p679
      $region22: #{decoder_forward.1} parent=11 // pred_check_branch
        %749 = sbr.rel (%p747) target = $region24
      $region23: #{decoder_forward.1} parent=11 // pred_region
        _
      $region24: #{decoder_forward.1} parent=11 // pred_fallthru
        _
      // Predicated region
      $region25: #{decoder_forward.1} parent=11 // pred_check
        %p750 = pneg %p700
      $region26: #{decoder_forward.1} parent=11 // pred_check_branch
        %752 = sbr.rel (%p750) target = $region28
      $region27: #{decoder_forward.1} parent=11 // pred_region
        _
      $region28: #{decoder_forward.1} parent=11 // pred_fallthru
        _
    $region12: #{decoder_forward.1} parent=5 // pred_fallthru
      _
    %p753 = scmp.lt.s32.totalorder %s32, 4
    // Predicated region
    $region29: #{decoder_forward.1} parent=5 // pred_check
      %p754 = pneg %p753
    $region30: #{decoder_forward.1} parent=5 // pred_check_branch
      %756 = sbr.rel (%p754) target = $region32
    $region31: #{decoder_forward.1} parent=5 // pred_region
      // Predicated region
      $region33: #{decoder_forward.1} parent=31 // pred_check
        %p757 = pneg %p64
      $region34: #{decoder_forward.1} parent=31 // pred_check_branch
        %759 = sbr.rel (%p757) target = $region36
      $region35: #{decoder_forward.1} parent=31 // pred_region
        %p760 = scmp.lt.s32.totalorder %s39, 1
        %s761 = scalar_select %p760, %s39, 1
        %s762 = smul.addr %s761, 8
        %s763 = scalar_lea.vmem %s0, %s762
      $region36: #{decoder_forward.1} parent=31 // pred_fallthru
        _
      // Predicated region
      $region37: #{decoder_forward.1} parent=31 // pred_check
        %p764 = pneg %p90
      $region38: #{decoder_forward.1} parent=31 // pred_check_branch
        %766 = sbr.rel (%p764) target = $region40
      $region39: #{decoder_forward.1} parent=31 // pred_region
        %p767 = scmp.lt.s32.totalorder %s39, 1
        %s768 = scalar_select %p767, %s39, 1
        %s769 = smul.addr %s768, 8
        %s770 = scalar_lea.vmem %s1, %s769
      $region40: #{decoder_forward.1} parent=31 // pred_fallthru
        _
      // Predicated region
      $region41: #{decoder_forward.1} parent=31 // pred_check
        %p771 = pneg %p158
      $region42: #{decoder_forward.1} parent=31 // pred_check_branch
        %773 = sbr.rel (%p771) target = $region44
      $region43: #{decoder_forward.1} parent=31 // pred_region
        %p774 = scmp.lt.s32.totalorder %s40, 1
        %s775 = scalar_select %p774, %s40, 1
        %s776 = smul.addr %s775, 4
        %s777 = smul.addr %s776, 4
        %s778 = scalar_lea.vmem %s4, %s777
      $region44: #{decoder_forward.1} parent=31 // pred_fallthru
        _
      // Predicated region
      $region45: #{decoder_forward.1} parent=31 // pred_check
        %p779 = pneg %p184
      $region46: #{decoder_forward.1} parent=31 // pred_check_branch
        %781 = sbr.rel (%p779) target = $region48
      $region47: #{decoder_forward.1} parent=31 // pred_region
        %p782 = scmp.lt.s32.totalorder %s40, 1
        %s783 = scalar_select %p782, %s40, 1
        %s784 = scalar_lea.vmem %s5, %s783
      $region48: #{decoder_forward.1} parent=31 // pred_fallthru
        _
      // Predicated region
      $region49: #{decoder_forward.1} parent=31 // pred_check
        %p785 = pneg %p210
      $region50: #{decoder_forward.1} parent=31 // pred_check_branch
        %787 = sbr.rel (%p785) target = $region52
      $region51: #{decoder_forward.1} parent=31 // pred_region
        %p788 = scmp.lt.s32.totalorder %s40, 1
        %s789 = scalar_select %p788, %s40, 1
        %s790 = smul.addr %s789, 4
        %s791 = smul.addr %s790, 4
        %s792 = scalar_lea.vmem %s6, %s791
      $region52: #{decoder_forward.1} parent=31 // pred_fallthru
        _
      // Predicated region
      $region53: #{decoder_forward.1} parent=31 // pred_check
        %p793 = pneg %p236
      $region54: #{decoder_forward.1} parent=31 // pred_check_branch
        %795 = sbr.rel (%p793) target = $region56
      $region55: #{decoder_forward.1} parent=31 // pred_region
        %p796 = scmp.lt.s32.totalorder %s40, 1
        %s797 = scalar_select %p796, %s40, 1
        %s798 = scalar_lea.vmem %s7, %s797
      $region56: #{decoder_forward.1} parent=31 // pred_fallthru
        _
      // Predicated region
      $region57: #{decoder_forward.1} parent=31 // pred_check
        %p799 = pneg %p262
      $region58: #{decoder_forward.1} parent=31 // pred_check_branch
        %801 = sbr.rel (%p799) target = $region60
      $region59: #{decoder_forward.1} parent=31 // pred_region
        %p802 = scmp.lt.s32.totalorder %s40, 1
        %s803 = scalar_select %p802, %s40, 1
        %s804 = smul.addr %s803, 4
        %s805 = smul.addr %s804, 4
        %s806 = scalar_lea.vmem %s8, %s805
      $region60: #{decoder_forward.1} parent=31 // pred_fallthru
        _
      // Predicated region
      $region61: #{decoder_forward.1} parent=31 // pred_check
        %p807 = pneg %p288
      $region62: #{decoder_forward.1} parent=31 // pred_check_branch
        %809 = sbr.rel (%p807) target = $region64
      $region63: #{decoder_forward.1} parent=31 // pred_region
        %p810 = scmp.lt.s32.totalorder %s40, 1
        %s811 = scalar_select %p810, %s40, 1
        %s812 = scalar_lea.vmem %s9, %s811
      $region64: #{decoder_forward.1} parent=31 // pred_fallthru
        _
      // Predicated region
      $region65: #{decoder_forward.1} parent=31 // pred_check
        %p813 = pneg %p314
      $region66: #{decoder_forward.1} parent=31 // pred_check_branch
        %815 = sbr.rel (%p813) target = $region68
      $region67: #{decoder_forward.1} parent=31 // pred_region
        %p816 = scmp.lt.s32.totalorder %s40, 1
        %s817 = scalar_select %p816, %s40, 1
        %s818 = smul.addr %s817, 4
        %s819 = smul.addr %s818, 4
        %s820 = scalar_lea.vmem %s10, %s819
      $region68: #{decoder_forward.1} parent=31 // pred_fallthru
        _
      // Predicated region
      $region69: #{decoder_forward.1} parent=31 // pred_check
        %p821 = pneg %p340
      $region70: #{decoder_forward.1} parent=31 // pred_check_branch
        %823 = sbr.rel (%p821) target = $region72
      $region71: #{decoder_forward.1} parent=31 // pred_region
        %p824 = scmp.lt.s32.totalorder %s40, 1
        %s825 = scalar_select %p824, %s40, 1
        %s826 = scalar_lea.vmem %s11, %s825
      $region72: #{decoder_forward.1} parent=31 // pred_fallthru
        _
      // Predicated region
      $region73: #{decoder_forward.1} parent=31 // pred_check
        %p827 = pneg %p366
      $region74: #{decoder_forward.1} parent=31 // pred_check_branch
        %829 = sbr.rel (%p827) target = $region76
      $region75: #{decoder_forward.1} parent=31 // pred_region
        %p830 = scmp.lt.s32.totalorder %s40, 1
        %s831 = scalar_select %p830, %s40, 1
        %s832 = smul.addr %s831, 4
        %s833 = smul.addr %s832, 4
        %s834 = scalar_lea.vmem %s12, %s833
      $region76: #{decoder_forward.1} parent=31 // pred_fallthru
        _
      // Predicated region
      $region77: #{decoder_forward.1} parent=31 // pred_check
        %p835 = pneg %p392
      $region78: #{decoder_forward.1} parent=31 // pred_check_branch
        %837 = sbr.rel (%p835) target = $region80
      $region79: #{decoder_forward.1} parent=31 // pred_region
        %p838 = scmp.lt.s32.totalorder %s40, 1
        %s839 = scalar_select %p838, %s40, 1
        %s840 = scalar_lea.vmem %s13, %s839
      $region80: #{decoder_forward.1} parent=31 // pred_fallthru
        _
      // Predicated region
      $region81: #{decoder_forward.1} parent=31 // pred_check
        %p841 = pneg %p418
      $region82: #{decoder_forward.1} parent=31 // pred_check_branch
        %843 = sbr.rel (%p841) target = $region84
      $region83: #{decoder_forward.1} parent=31 // pred_region
        %p844 = scmp.lt.s32.totalorder %s40, 1
        %s845 = scalar_select %p844, %s40, 1
        %s846 = scalar_lea.vmem %s14, %s845
      $region84: #{decoder_forward.1} parent=31 // pred_fallthru
        _
      // Predicated region
      $region85: #{decoder_forward.1} parent=31 // pred_check
        %p847 = pneg %p444
      $region86: #{decoder_forward.1} parent=31 // pred_check_branch
        %849 = sbr.rel (%p847) target = $region88
      $region87: #{decoder_forward.1} parent=31 // pred_region
        %p850 = scmp.lt.s32.totalorder %s40, 1
        %s851 = scalar_select %p850, %s40, 1
        %s852 = scalar_lea.vmem %s15, %s851
      $region88: #{decoder_forward.1} parent=31 // pred_fallthru
        _
      // Predicated region
      $region89: #{decoder_forward.1} parent=31 // pred_check
        %p853 = pneg %p470
      $region90: #{decoder_forward.1} parent=31 // pred_check_branch
        %855 = sbr.rel (%p853) target = $region92
      $region91: #{decoder_forward.1} parent=31 // pred_region
        %p856 = scmp.lt.s32.totalorder %s40, 1
        %s857 = scalar_select %p856, %s40, 1
        %s858 = scalar_lea.vmem %s16, %s857
      $region92: #{decoder_forward.1} parent=31 // pred_fallthru
        _
      // Predicated region
      $region93: #{decoder_forward.1} parent=31 // pred_check
        %p859 = pneg %p496
      $region94: #{decoder_forward.1} parent=31 // pred_check_branch
        %861 = sbr.rel (%p859) target = $region96
      $region95: #{decoder_forward.1} parent=31 // pred_region
        %p862 = scmp.lt.s32.totalorder %s40, 1
        %s863 = scalar_select %p862, %s40, 1
        %s864 = scalar_lea.vmem %s17, %s863
      $region96: #{decoder_forward.1} parent=31 // pred_fallthru
        _
      // Predicated region
      $region97: #{decoder_forward.1} parent=31 // pred_check
        %p865 = pneg %p522
      $region98: #{decoder_forward.1} parent=31 // pred_check_branch
        %867 = sbr.rel (%p865) target = $region100
      $region99: #{decoder_forward.1} parent=31 // pred_region
        %p868 = scmp.lt.s32.totalorder %s40, 1
        %s869 = scalar_select %p868, %s40, 1
        %s870 = scalar_lea.vmem %s18, %s869
      $region100: #{decoder_forward.1} parent=31 // pred_fallthru
        _
      // Predicated region
      $region101: #{decoder_forward.1} parent=31 // pred_check
        %p871 = pneg %p548
      $region102: #{decoder_forward.1} parent=31 // pred_check_branch
        %873 = sbr.rel (%p871) target = $region104
      $region103: #{decoder_forward.1} parent=31 // pred_region
        %p874 = scmp.lt.s32.totalorder %s40, 1
        %s875 = scalar_select %p874, %s40, 1
        %s876 = scalar_lea.vmem %s19, %s875
      $region104: #{decoder_forward.1} parent=31 // pred_fallthru
        _
      // Predicated region
      $region105: #{decoder_forward.1} parent=31 // pred_check
        %p877 = pneg %p574
      $region106: #{decoder_forward.1} parent=31 // pred_check_branch
        %879 = sbr.rel (%p877) target = $region108
      $region107: #{decoder_forward.1} parent=31 // pred_region
        %p880 = scmp.lt.s32.totalorder %s40, 1
        %s881 = scalar_select %p880, %s40, 1
        %s882 = smul.addr %s881, 4
        %s883 = smul.addr %s882, 4
        %s884 = scalar_lea.vmem %s20, %s883
      $region108: #{decoder_forward.1} parent=31 // pred_fallthru
        _
      // Predicated region
      $region109: #{decoder_forward.1} parent=31 // pred_check
        %p885 = pneg %p600
      $region110: #{decoder_forward.1} parent=31 // pred_check_branch
        %887 = sbr.rel (%p885) target = $region112
      $region111: #{decoder_forward.1} parent=31 // pred_region
        %p888 = scmp.lt.s32.totalorder %s40, 1
        %s889 = scalar_select %p888, %s40, 1
        %s890 = scalar_lea.vmem %s21, %s889
      $region112: #{decoder_forward.1} parent=31 // pred_fallthru
        _
      // Predicated region
      $region113: #{decoder_forward.1} parent=31 // pred_check
        %p891 = pneg %p626
      $region114: #{decoder_forward.1} parent=31 // pred_check_branch
        %893 = sbr.rel (%p891) target = $region116
      $region115: #{decoder_forward.1} parent=31 // pred_region
        %p894 = scmp.lt.s32.totalorder %s40, 1
        %s895 = scalar_select %p894, %s40, 1
        %s896 = smul.addr %s895, 8
        %s897 = smul.addr %s896, 4
        %s898 = scalar_lea.vmem %s22, %s897
      $region116: #{decoder_forward.1} parent=31 // pred_fallthru
        _
      // Predicated region
      $region117: #{decoder_forward.1} parent=31 // pred_check
        %p899 = pneg %p652
      $region118: #{decoder_forward.1} parent=31 // pred_check_branch
        %901 = sbr.rel (%p899) target = $region120
      $region119: #{decoder_forward.1} parent=31 // pred_region
        %p902 = scmp.lt.s32.totalorder %s40, 1
        %s903 = scalar_select %p902, %s40, 1
        %s904 = scalar_lea.vmem %s23, %s903
      $region120: #{decoder_forward.1} parent=31 // pred_fallthru
        _
    $region32: #{decoder_forward.1} parent=5 // pred_fallthru
      _
    %p905 = scmp.le.s32.totalorder 1, %s32
    %p906 = scmp.lt.s32.totalorder %s32, 5
    %p907 = pnand %p905, %p906
    %p908 = pneg %p907
    // Predicated region
    $region121: #{decoder_forward.1} parent=5 // pred_check
      _
    $region122: #{decoder_forward.1} parent=5 // pred_check_branch
      %910 = sbr.rel (%p907) target = $region124
    $region123: #{decoder_forward.1} parent=5 // pred_region
      %s911 = ssub.s32 %s32, 1
      %p912 = scmp.lt.s32.totalorder %s41, 1
      %s913 = scalar_select %p912, %s41, 1
      %s914 = smul.addr %s913, 8
      %s915 = scalar_lea.vmem %s0, %s914
      %p916 = pneg %p70
      %p917 = pneg %p67
      %p918 = scmp.lt.s32.totalorder %s41, 1
      %s919 = scalar_select %p918, %s41, 1
      %s920 = smul.addr %s919, 8
      %s921 = scalar_lea.vmem %s1, %s920
      %p922 = pneg %p96
      %p923 = pneg %p93
      %p924 = pneg %p117
      %p925 = pneg %p114
      %p926 = pneg %p138
      %p927 = pneg %p135
      %p928 = scmp.lt.s32.totalorder %s42, 1
      %s929 = scalar_select %p928, %s42, 1
      %s930 = smul.addr %s929, 4
      %s931 = smul.addr %s930, 4
      %s932 = scalar_lea.vmem %s4, %s931
      %p933 = pneg %p164
      %p934 = pneg %p161
      %p935 = scmp.lt.s32.totalorder %s42, 1
      %s936 = scalar_select %p935, %s42, 1
      %s937 = scalar_lea.vmem %s5, %s936
      %p938 = pneg %p190
      %p939 = pneg %p187
      %p940 = scmp.lt.s32.totalorder %s42, 1
      %s941 = scalar_select %p940, %s42, 1
      %s942 = smul.addr %s941, 4
      %s943 = smul.addr %s942, 4
      %s944 = scalar_lea.vmem %s6, %s943
      %p945 = pneg %p216
      %p946 = pneg %p213
      %p947 = scmp.lt.s32.totalorder %s42, 1
      %s948 = scalar_select %p947, %s42, 1
      %s949 = scalar_lea.vmem %s7, %s948
      %p950 = pneg %p242
      %p951 = pneg %p239
      %p952 = scmp.lt.s32.totalorder %s42, 1
      %s953 = scalar_select %p952, %s42, 1
      %s954 = smul.addr %s953, 4
      %s955 = smul.addr %s954, 4
      %s956 = scalar_lea.vmem %s8, %s955
      %p957 = pneg %p268
      %p958 = pneg %p265
      %p959 = scmp.lt.s32.totalorder %s42, 1
      %s960 = scalar_select %p959, %s42, 1
      %s961 = scalar_lea.vmem %s9, %s960
      %p962 = pneg %p294
      %p963 = pneg %p291
      %p964 = scmp.lt.s32.totalorder %s42, 1
      %s965 = scalar_select %p964, %s42, 1
      %s966 = smul.addr %s965, 4
      %s967 = smul.addr %s966, 4
      %s968 = scalar_lea.vmem %s10, %s967
      %p969 = pneg %p320
      %p970 = pneg %p317
      %p971 = scmp.lt.s32.totalorder %s42, 1
      %s972 = scalar_select %p971, %s42, 1
      %s973 = scalar_lea.vmem %s11, %s972
      %p974 = pneg %p346
      %p975 = pneg %p343
      %p976 = scmp.lt.s32.totalorder %s42, 1
      %s977 = scalar_select %p976, %s42, 1
      %s978 = smul.addr %s977, 4
      %s979 = smul.addr %s978, 4
      %s980 = scalar_lea.vmem %s12, %s979
      %p981 = pneg %p372
      %p982 = pneg %p369
      %p983 = scmp.lt.s32.totalorder %s42, 1
      %s984 = scalar_select %p983, %s42, 1
      %s985 = scalar_lea.vmem %s13, %s984
      %p986 = pneg %p398
      %p987 = pneg %p395
      %p988 = scmp.lt.s32.totalorder %s42, 1
      %s989 = scalar_select %p988, %s42, 1
      %s990 = scalar_lea.vmem %s14, %s989
      %p991 = pneg %p424
      %p992 = pneg %p421
      %p993 = scmp.lt.s32.totalorder %s42, 1
      %s994 = scalar_select %p993, %s42, 1
      %s995 = scalar_lea.vmem %s15, %s994
      %p996 = pneg %p450
      %p997 = pneg %p447
      %p998 = scmp.lt.s32.totalorder %s42, 1
      %s999 = scalar_select %p998, %s42, 1
      %s1000 = scalar_lea.vmem %s16, %s999
      %p1001 = pneg %p476
      %p1002 = pneg %p473
      %p1003 = scmp.lt.s32.totalorder %s42, 1
      %s1004 = scalar_select %p1003, %s42, 1
      %s1005 = scalar_lea.vmem %s17, %s1004
      %p1006 = pneg %p502
      %p1007 = pneg %p499
      %p1008 = scmp.lt.s32.totalorder %s42, 1
      %s1009 = scalar_select %p1008, %s42, 1
      %s1010 = scalar_lea.vmem %s18, %s1009
      %p1011 = pneg %p528
      %p1012 = pneg %p525
      %p1013 = scmp.lt.s32.totalorder %s42, 1
      %s1014 = scalar_select %p1013, %s42, 1
      %s1015 = scalar_lea.vmem %s19, %s1014
      %p1016 = pneg %p554
      %p1017 = pneg %p551
      %p1018 = scmp.lt.s32.totalorder %s42, 1
      %s1019 = scalar_select %p1018, %s42, 1
      %s1020 = smul.addr %s1019, 4
      %s1021 = smul.addr %s1020, 4
      %s1022 = scalar_lea.vmem %s20, %s1021
      %p1023 = pneg %p580
      %p1024 = pneg %p577
      %p1025 = scmp.lt.s32.totalorder %s42, 1
      %s1026 = scalar_select %p1025, %s42, 1
      %s1027 = scalar_lea.vmem %s21, %s1026
      %p1028 = pneg %p606
      %p1029 = pneg %p603
      %p1030 = scmp.lt.s32.totalorder %s42, 1
      %s1031 = scalar_select %p1030, %s42, 1
      %s1032 = smul.addr %s1031, 8
      %s1033 = smul.addr %s1032, 4
      %s1034 = scalar_lea.vmem %s22, %s1033
      %p1035 = pneg %p632
      %p1036 = pneg %p629
      %p1037 = scmp.lt.s32.totalorder %s42, 1
      %s1038 = scalar_select %p1037, %s42, 1
      %s1039 = scalar_lea.vmem %s23, %s1038
      %p1040 = pneg %p658
      %p1041 = pneg %p655
      %p1042 = pneg %p679
      %p1043 = pneg %p676
      %p1044 = pneg %p700
      %p1045 = pneg %p697
      %p1046 = pneg %p726
      %p1047 = pneg %p723
      %p1048 = scmp.lt.s32.totalorder %s41, 1
      %s1049 = scalar_select %p1048, %s41, 1
      %s1050 = smul.addr %s1049, 8
      %s1051 = scalar_lea.vmem %s26, %s1050
      %p1052 = scmp.lt.s32.totalorder %s41, 1
      %s1053 = scalar_select %p1052, %s41, 1
      %s1054 = smul.addr %s1053, 8
      %s1055 = scalar_lea.vmem %s0, %s1054
      %p1056 = scmp.lt.s32.totalorder %s41, 1
      %s1057 = scalar_select %p1056, %s41, 1
      %s1058 = smul.addr %s1057, 8
      %s1059 = scalar_lea.vmem %s1, %s1058
      %p1060 = scmp.lt.s32.totalorder %s42, 1
      %s1061 = scalar_select %p1060, %s42, 1
      %s1062 = smul.addr %s1061, 4
      %s1063 = smul.addr %s1062, 4
      %s1064 = scalar_lea.vmem %s4, %s1063
      %p1065 = scmp.lt.s32.totalorder %s42, 1
      %s1066 = scalar_select %p1065, %s42, 1
      %s1067 = scalar_lea.vmem %s5, %s1066
      %p1068 = scmp.lt.s32.totalorder %s42, 1
      %s1069 = scalar_select %p1068, %s42, 1
      %s1070 = smul.addr %s1069, 4
      %s1071 = smul.addr %s1070, 4
      %s1072 = scalar_lea.vmem %s6, %s1071
      %p1073 = scmp.lt.s32.totalorder %s42, 1
      %s1074 = scalar_select %p1073, %s42, 1
      %s1075 = scalar_lea.vmem %s7, %s1074
      %p1076 = scmp.lt.s32.totalorder %s42, 1
      %s1077 = scalar_select %p1076, %s42, 1
      %s1078 = smul.addr %s1077, 4
      %s1079 = smul.addr %s1078, 4
      %s1080 = scalar_lea.vmem %s8, %s1079
      %p1081 = scmp.lt.s32.totalorder %s42, 1
      %s1082 = scalar_select %p1081, %s42, 1
      %s1083 = scalar_lea.vmem %s9, %s1082
      %p1084 = scmp.lt.s32.totalorder %s42, 1
      %s1085 = scalar_select %p1084, %s42, 1
      %s1086 = smul.addr %s1085, 4
      %s1087 = smul.addr %s1086, 4
      %s1088 = scalar_lea.vmem %s10, %s1087
      %p1089 = scmp.lt.s32.totalorder %s42, 1
      %s1090 = scalar_select %p1089, %s42, 1
      %s1091 = scalar_lea.vmem %s11, %s1090
      %p1092 = scmp.lt.s32.totalorder %s42, 1
      %s1093 = scalar_select %p1092, %s42, 1
      %s1094 = smul.addr %s1093, 4
      %s1095 = smul.addr %s1094, 4
      %s1096 = scalar_lea.vmem %s12, %s1095
      %p1097 = scmp.lt.s32.totalorder %s42, 1
      %s1098 = scalar_select %p1097, %s42, 1
      %s1099 = scalar_lea.vmem %s13, %s1098
      %p1100 = scmp.lt.s32.totalorder %s42, 1
      %s1101 = scalar_select %p1100, %s42, 1
      %s1102 = scalar_lea.vmem %s14, %s1101
      %p1103 = scmp.lt.s32.totalorder %s42, 1
      %s1104 = scalar_select %p1103, %s42, 1
      %s1105 = scalar_lea.vmem %s15, %s1104
      %p1106 = scmp.lt.s32.totalorder %s42, 1
      %s1107 = scalar_select %p1106, %s42, 1
      %s1108 = scalar_lea.vmem %s16, %s1107
      %p1109 = scmp.lt.s32.totalorder %s42, 1
      %s1110 = scalar_select %p1109, %s42, 1
      %s1111 = scalar_lea.vmem %s17, %s1110
      %p1112 = scmp.lt.s32.totalorder %s42, 1
      %s1113 = scalar_select %p1112, %s42, 1
      %s1114 = scalar_lea.vmem %s18, %s1113
      %p1115 = scmp.lt.s32.totalorder %s42, 1
      %s1116 = scalar_select %p1115, %s42, 1
      %s1117 = scalar_lea.vmem %s19, %s1116
      %p1118 = scmp.lt.s32.totalorder %s42, 1
      %s1119 = scalar_select %p1118, %s42, 1
      %s1120 = smul.addr %s1119, 4
      %s1121 = smul.addr %s1120, 4
      %s1122 = scalar_lea.vmem %s20, %s1121
      %p1123 = scmp.lt.s32.totalorder %s42, 1
      %s1124 = scalar_select %p1123, %s42, 1
      %s1125 = scalar_lea.vmem %s21, %s1124
      %p1126 = scmp.lt.s32.totalorder %s42, 1
      %s1127 = scalar_select %p1126, %s42, 1
      %s1128 = smul.addr %s1127, 8
      %s1129 = smul.addr %s1128, 4
      %s1130 = scalar_lea.vmem %s22, %s1129
      %p1131 = scmp.lt.s32.totalorder %s42, 1
      %s1132 = scalar_select %p1131, %s42, 1
      %s1133 = scalar_lea.vmem %s23, %s1132
      %p1134 = scmp.lt.s32.totalorder %s41, 1
      %s1135 = scalar_select %p1134, %s41, 1
      %s1136 = smul.addr %s1135, 8
      %s1137 = scalar_lea.vmem %s26, %s1136
      %p1139 = scmp.eq.s32.totalorder %s42, 0
      // Predicated region
      $region125: #{decoder_forward.1} parent=123 // pred_check
        %p1140 = pneg %p1139
      $region126: #{decoder_forward.1} parent=123 // pred_check_branch
        %1142 = sbr.rel (%p1140) target = $region128
      $region127: #{decoder_forward.1} parent=123 // pred_region
        %v1143 = vld [vmem:[%s1055] sm:$0xff]
        %vm1144 = vcmask 261120
        %1145 = vst.msk [vmem:[#allocation2] sm:$0xff] %vm1144, %v1143
      $region128: #{decoder_forward.1} parent=123 // pred_fallthru
        _
      %v1146 = vld [vmem:[#allocation2] sm:$0xff]
      %v1147 = vld [vmem:[%s1059] sm:$0xff]
      %v1148 = vld [vmem:[%s2] sm:$0xff]
      %v1149 = vld [vmem:[%s3] sm:$0xff]
      %v1150 = vld [vmem:[%s1064] sm:$0xf]
      %v1151 = vld [vmem:[%s1064 + $0x4] sm:$0xf]
      %v1152 = vld [vmem:[%s1064 + $0x8] sm:$0xf]
      %v1153 = vld [vmem:[%s1064 + $0xc] sm:$0xf]
      %v1154 = vld [vmem:[%s1067] sm:$0x1]
      %v1155 = vpack.c.bf16 %v1146, %v1146
      %v1157 = vperm.slane %v1154, 0
      %v1163 = vunpack.c.l.b16 %v1150
      %v1164 = vunpack.c.l.b16 %v1151
      %v1165 = vunpack.c.l.b16 %v1152
      %v1166 = vunpack.c.l.b16 %v1153
      %v1167 = vpack.c.b16 %v1164, %v1163
      %v1168 = vpack.c.b16 %v1166, %v1165
      %vm1171 = vcmask 261120
      %v1173 = vsel %vm1171, %v1155, 0
      %1175 = vmatpush.bf16.msra.mxu0 0
      %1176 = vmatpush.bf16.msra.mxu0 0
      %1177 = vmatpush.bf16.msra.mxu0 0
      %1178 = vmatpush.bf16.msra.mxu0 0
      %1179 = vmatpush.bf16.msra.mxu0 0
      %1180 = vmatpush.bf16.msra.mxu0 0
      %1181 = vmatpush.bf16.msra.mxu0 %v1168
      %1182 = vmatpush.bf16.msra.mxu0 %v1167
      %1183 = vmatmul.bf16.gmra.mxu0 %v1173
      %v1184 = vpop.f32.mrf.mxu0
      %v1185 = vadd.f32 %v1157, %v1184
      %v1186 = vpop.f32.mrf.mxu0
      %1187 = vdwg.mxu0
      %v1188 = vld [vmem:[%s1072] sm:$0xf]
      %v1189 = vld [vmem:[%s1072 + $0x4] sm:$0xf]
      %v1190 = vld [vmem:[%s1072 + $0x8] sm:$0xf]
      %v1191 = vld [vmem:[%s1072 + $0xc] sm:$0xf]
      %v1192 = vld [vmem:[%s1075] sm:$0x1]
      %1194 = vrot.lane.b32.xlu0 %v1185, 120
      %v1195 = vpop.permute.xlu0 %1194
      %1197 = vrot.lane.b32.xlu0 %v1185, 112
      %v1198 = vpop.permute.xlu0 %1197
      %1200 = vrot.lane.b32.xlu0 %v1185, 104
      %v1201 = vpop.permute.xlu0 %1200
      %v1203 = vpack.c.bf16 %v1185, %v1185
      %v1204 = vpack.c.bf16 %v1195, %v1195
      %v1205 = vpack.c.bf16 %v1198, %v1198
      %v1206 = vpack.c.bf16 %v1201, %v1201
      %v1208 = vunpack.c.l.b16 %v1203
      %v1209 = vpack.c.b16 %v1208, %v1208
      %1210 = vrot.lane.b32.xlu0 %v1209, 96
      %v1211 = vpop.permute.xlu0 %1210
      %vm1212 = vcmask 64512
      %v1214 = vsel %vm1212, %v1203, 0
      %v1217 = vsel %vm1212, %v1211, 0
      %1219 = vmatpush.bf16.xpose.msra.mxu0 0
      %1220 = vmatpush.bf16.xpose.msra.mxu0 0
      %1221 = vmatpush.bf16.xpose.msra.mxu0 0
      %1222 = vmatpush.bf16.xpose.msra.mxu0 0
      %1223 = vmatpush.bf16.xpose.msra.mxu0 0
      %1224 = vmatpush.bf16.xpose.msra.mxu0 0
      %1225 = vmatpush.bf16.xpose.msra.mxu0 0
      %1226 = vmatpush.bf16.xpose.msra.mxu0 %v1217
      %1227 = vmatmul.bf16.gmra.mxu0 %v1214
      %v1228 = vpop.f32.mrf.mxu0
      %v1229 = vadd.f32 0.0, %v1228
      %v1230 = vpop.f32.mrf.mxu0
      %1231 = vdwg.mxu0
      %v1233 = vunpack.c.l.b16 %v1204
      %v1234 = vpack.c.b16 %v1233, %v1233
      %1235 = vrot.lane.b32.xlu0 %v1234, 96
      %v1236 = vpop.permute.xlu0 %1235
      %v1238 = vsel %vm1212, %v1204, 0
      %v1241 = vsel %vm1212, %v1236, 0
      %1243 = vmatpush.bf16.xpose.msra.mxu0 0
      %1244 = vmatpush.bf16.xpose.msra.mxu0 0
      %1245 = vmatpush.bf16.xpose.msra.mxu0 0
      %1246 = vmatpush.bf16.xpose.msra.mxu0 0
      %1247 = vmatpush.bf16.xpose.msra.mxu0 0
      %1248 = vmatpush.bf16.xpose.msra.mxu0 0
      %1249 = vmatpush.bf16.xpose.msra.mxu0 0
      %1250 = vmatpush.bf16.xpose.msra.mxu0 %v1241
      %1251 = vmatmul.bf16.gmra.mxu0 %v1238
      %v1252 = vpop.f32.mrf.mxu0
      %v1253 = vadd.f32 0.0, %v1252
      %v1254 = vpop.f32.mrf.mxu0
      %1255 = vdwg.mxu0
      %v1257 = vunpack.c.l.b16 %v1205
      %v1258 = vpack.c.b16 %v1257, %v1257
      %1259 = vrot.lane.b32.xlu0 %v1258, 96
      %v1260 = vpop.permute.xlu0 %1259
      %v1262 = vsel %vm1212, %v1205, 0
      %v1265 = vsel %vm1212, %v1260, 0
      %1267 = vmatpush.bf16.xpose.msra.mxu0 0
      %1268 = vmatpush.bf16.xpose.msra.mxu0 0
      %1269 = vmatpush.bf16.xpose.msra.mxu0 0
      %1270 = vmatpush.bf16.xpose.msra.mxu0 0
      %1271 = vmatpush.bf16.xpose.msra.mxu0 0
      %1272 = vmatpush.bf16.xpose.msra.mxu0 0
      %1273 = vmatpush.bf16.xpose.msra.mxu0 0
      %1274 = vmatpush.bf16.xpose.msra.mxu0 %v1265
      %1275 = vmatmul.bf16.gmra.mxu0 %v1262
      %v1276 = vpop.f32.mrf.mxu0
      %v1277 = vadd.f32 0.0, %v1276
      %v1278 = vpop.f32.mrf.mxu0
      %1279 = vdwg.mxu0
      %v1281 = vunpack.c.l.b16 %v1206
      %v1282 = vpack.c.b16 %v1281, %v1281
      %1283 = vrot.lane.b32.xlu0 %v1282, 96
      %v1284 = vpop.permute.xlu0 %1283
      %v1286 = vsel %vm1212, %v1206, 0
      %v1289 = vsel %vm1212, %v1284, 0
      %1291 = vmatpush.bf16.xpose.msra.mxu0 0
      %1292 = vmatpush.bf16.xpose.msra.mxu0 0
      %1293 = vmatpush.bf16.xpose.msra.mxu0 0
      %1294 = vmatpush.bf16.xpose.msra.mxu0 0
      %1295 = vmatpush.bf16.xpose.msra.mxu0 0
      %1296 = vmatpush.bf16.xpose.msra.mxu0 0
      %1297 = vmatpush.bf16.xpose.msra.mxu0 0
      %1298 = vmatpush.bf16.xpose.msra.mxu0 %v1289
      %1299 = vmatmul.bf16.gmra.mxu0 %v1286
      %v1300 = vpop.f32.mrf.mxu0
      %v1301 = vadd.f32 0.0, %v1300
      %v1302 = vpop.f32.mrf.mxu0
      %1303 = vdwg.mxu0
      %v1304 = vmul.f32 %v1229, 0.35355338
      %v1305 = vmul.f32 %v1253, 0.35355338
      %v1306 = vmul.f32 %v1277, 0.35355338
      %v1307 = vmul.f32 %v1301, 0.35355338
      %v1308 = vadd.f32 %v1304, %v1148
      %v1309 = vadd.f32 %v1305, %v1148
      %v1310 = vadd.f32 %v1306, %v1148
      %v1311 = vadd.f32 %v1307, %v1148
      %v1312 = vsel %vm1212, %v1308, -inf
      %1313 = vmax.xlane.f32.xlu0 %v1312
      %v1314 = vpop.xlane.xlu0 %1313
      %v1315 = vsel %vm1212, %v1309, -inf
      %1316 = vmax.xlane.f32.xlu0 %v1315
      %v1317 = vpop.xlane.xlu0 %1316
      %v1318 = vsel %vm1212, %v1310, -inf
      %1319 = vmax.xlane.f32.xlu0 %v1318
      %v1320 = vpop.xlane.xlu0 %1319
      %v1321 = vsel %vm1212, %v1311, -inf
      %1322 = vmax.xlane.f32.xlu0 %v1321
      %v1323 = vpop.xlane.xlu0 %1322
      %v1324 = vsub.f32 %v1308, %v1314
      %v1325 = vsub.f32 %v1309, %v1317
      %v1326 = vsub.f32 %v1310, %v1320
      %v1327 = vsub.f32 %v1311, %v1323
      %v1328 = vmul.f32 %v1324, 1.442695
      %v1329 = vpow.pop %v1328
      %v1330 = vmul.f32 %v1325, 1.442695
      %v1331 = vpow.pop %v1330
      %v1332 = vmul.f32 %v1326, 1.442695
      %v1333 = vpow.pop %v1332
      %v1334 = vmul.f32 %v1327, 1.442695
      %v1335 = vpow.pop %v1334
      %v1336 = vsel %vm1212, %v1329, 0.0
      %1337 = vadd.xlane.f32.xlu0 %v1336
      %v1338 = vpop.xlane.xlu0 %1337
      %v1339 = vsel %vm1212, %v1331, 0.0
      %1340 = vadd.xlane.f32.xlu0 %v1339
      %v1341 = vpop.xlane.xlu0 %1340
      %v1342 = vsel %vm1212, %v1333, 0.0
      %1343 = vadd.xlane.f32.xlu0 %v1342
      %v1344 = vpop.xlane.xlu0 %1343
      %v1345 = vsel %vm1212, %v1335, 0.0
      %1346 = vadd.xlane.f32.xlu0 %v1345
      %v1347 = vpop.xlane.xlu0 %1346
      %v1348 = vrcp.pop %v1338
      %v1349 = vrcp.pop %v1341
      %v1350 = vrcp.pop %v1344
      %v1351 = vrcp.pop %v1347
      %v1352 = vmul.f32 %v1329, %v1348
      %v1353 = vmul.f32 %v1331, %v1349
      %v1354 = vmul.f32 %v1333, %v1350
      %v1355 = vmul.f32 %v1335, %v1351
      %v1356 = vpack.c.bf16 %v1352, %v1352
      %v1357 = vpack.c.bf16 %v1353, %v1353
      %v1358 = vpack.c.bf16 %v1354, %v1354
      %v1359 = vpack.c.bf16 %v1355, %v1355
      %1360 = vrot.lane.b32.xlu0 %v1209, 64
      %v1361 = vpop.permute.xlu0 %1360
      %v1363 = vsel %vm1212, %v1356, 0
      %vm1365 = vcmask 1043456
      %v1367 = vsel %vm1365, %v1361, 0
      %1369 = vmatpush.bf16.msra.mxu0 0
      %1370 = vmatpush.bf16.msra.mxu0 0
      %1371 = vmatpush.bf16.msra.mxu0 0
      %1372 = vmatpush.bf16.msra.mxu0 0
      %1373 = vmatpush.bf16.msra.mxu0 0
      %1374 = vmatpush.bf16.msra.mxu0 0
      %1375 = vmatpush.bf16.msra.mxu0 0
      %1376 = vmatpush.bf16.msra.mxu0 %v1367
      %1377 = vmatmul.bf16.gmra.mxu0 %v1363
      %v1378 = vpop.f32.mrf.mxu0
      %v1379 = vadd.f32 0.0, %v1378
      %v1380 = vpop.f32.mrf.mxu0
      %1381 = vdwg.mxu0
      %1382 = vrot.lane.b32.xlu0 %v1234, 64
      %v1383 = vpop.permute.xlu0 %1382
      %v1385 = vsel %vm1212, %v1357, 0
      %v1388 = vsel %vm1365, %v1383, 0
      %1390 = vmatpush.bf16.msra.mxu0 0
      %1391 = vmatpush.bf16.msra.mxu0 0
      %1392 = vmatpush.bf16.msra.mxu0 0
      %1393 = vmatpush.bf16.msra.mxu0 0
      %1394 = vmatpush.bf16.msra.mxu0 0
      %1395 = vmatpush.bf16.msra.mxu0 0
      %1396 = vmatpush.bf16.msra.mxu0 0
      %1397 = vmatpush.bf16.msra.mxu0 %v1388
      %1398 = vmatmul.bf16.gmra.mxu0 %v1385
      %v1399 = vpop.f32.mrf.mxu0
      %v1400 = vadd.f32 0.0, %v1399
      %v1401 = vpop.f32.mrf.mxu0
      %1402 = vdwg.mxu0
      %1403 = vrot.lane.b32.xlu0 %v1258, 64
      %v1404 = vpop.permute.xlu0 %1403
      %v1406 = vsel %vm1212, %v1358, 0
      %v1409 = vsel %vm1365, %v1404, 0
      %1411 = vmatpush.bf16.msra.mxu0 0
      %1412 = vmatpush.bf16.msra.mxu0 0
      %1413 = vmatpush.bf16.msra.mxu0 0
      %1414 = vmatpush.bf16.msra.mxu0 0
      %1415 = vmatpush.bf16.msra.mxu0 0
      %1416 = vmatpush.bf16.msra.mxu0 0
      %1417 = vmatpush.bf16.msra.mxu0 0
      %1418 = vmatpush.bf16.msra.mxu0 %v1409
      %1419 = vmatmul.bf16.gmra.mxu0 %v1406
      %v1420 = vpop.f32.mrf.mxu0
      %v1421 = vadd.f32 0.0, %v1420
      %v1422 = vpop.f32.mrf.mxu0
      %1423 = vdwg.mxu0
      %1424 = vrot.lane.b32.xlu0 %v1282, 64
      %v1425 = vpop.permute.xlu0 %1424
      %v1427 = vsel %vm1212, %v1359, 0
      %v1430 = vsel %vm1365, %v1425, 0
      %1432 = vmatpush.bf16.msra.mxu0 0
      %1433 = vmatpush.bf16.msra.mxu0 0
      %1434 = vmatpush.bf16.msra.mxu0 0
      %1435 = vmatpush.bf16.msra.mxu0 0
      %1436 = vmatpush.bf16.msra.mxu0 0
      %1437 = vmatpush.bf16.msra.mxu0 0
      %1438 = vmatpush.bf16.msra.mxu0 0
      %1439 = vmatpush.bf16.msra.mxu0 %v1430
      %1440 = vmatmul.bf16.gmra.mxu0 %v1427
      %v1441 = vpop.f32.mrf.mxu0
      %v1442 = vadd.f32 0.0, %v1441
      %v1443 = vpop.f32.mrf.mxu0
      %1444 = vdwg.mxu0
      %1446 = vrot.lane.b32.xlu0 %v1400, 8
      %v1447 = vpop.permute.xlu0 %1446
      %1450 = vrot.lane.b32.xlu0 %v1421, 16
      %v1451 = vpop.permute.xlu0 %1450
      %1454 = vrot.lane.b32.xlu0 %v1442, 24
      %v1455 = vpop.permute.xlu0 %1454
      %v1457 = vsel %vm1212, %v1379, %v1447
      %vm1458 = vcmask 130048
      %v1459 = vsel %vm1458, %v1457, %v1451
      %vm1460 = vcmask 195584
      %v1461 = vsel %vm1460, %v1459, %v1455
      %v1462 = vpack.c.bf16 %v1461, %v1461
      %v1464 = vperm.slane %v1192, 0
      %v1470 = vunpack.c.l.b16 %v1188
      %v1471 = vunpack.c.l.b16 %v1189
      %v1472 = vunpack.c.l.b16 %v1190
      %v1473 = vunpack.c.l.b16 %v1191
      %v1474 = vpack.c.b16 %v1471, %v1470
      %v1475 = vpack.c.b16 %v1473, %v1472
      %v1479 = vsel %vm1171, %v1462, 0
      %1481 = vmatpush.bf16.msra.mxu0 0
      %1482 = vmatpush.bf16.msra.mxu0 0
      %1483 = vmatpush.bf16.msra.mxu0 0
      %1484 = vmatpush.bf16.msra.mxu0 0
      %1485 = vmatpush.bf16.msra.mxu0 0
      %1486 = vmatpush.bf16.msra.mxu0 0
      %1487 = vmatpush.bf16.msra.mxu0 %v1475
      %1488 = vmatpush.bf16.msra.mxu0 %v1474
      %1489 = vmatmul.bf16.gmra.mxu0 %v1479
      %v1490 = vpop.f32.mrf.mxu0
      %v1491 = vadd.f32 %v1464, %v1490
      %v1492 = vpop.f32.mrf.mxu0
      %1493 = vdwg.mxu0
      %v1494 = vadd.f32 %v1146, %v1491
      %v1495 = vld [vmem:[%s1102] sm:$0x1]
      %v1496 = vld [vmem:[%s1105] sm:$0x1]
      %v1497 = vsel %vm1171, %v1494, 0.0
      %1498 = vadd.xlane.f32.xlu0 %v1497
      %v1499 = vpop.xlane.xlu0 %1498
      %v1500 = vrcp.pop 32.0
      %v1501 = vmul.f32 32.0, %v1500
      %v1502 = vsub.f32 1.0, %v1501
      %v1503 = vmul.f32 %v1500, %v1502
      %v1504 = vadd.f32 %v1500, %v1503
      %vm1505 = vweird.f32 %v1500
      %v1506 = vsel %vm1505, %v1500, %v1504
      %v1507 = vmul.f32 %v1499, %v1506
      %v1508 = vsub.f32 %v1494, %v1507
      %v1509 = vmul.f32 %v1508, %v1508
      %v1510 = vsel %vm1171, %v1509, 0.0
      %1511 = vadd.xlane.f32.xlu0 %v1510
      %v1512 = vpop.xlane.xlu0 %1511
      %v1513 = vmul.f32 %v1512, %v1506
      %v1514 = vadd.f32 %v1513, 1e-05
      %v1515 = vrsqrt.pop %v1514
      %v1516 = vmul.f32 %v1515, %v1514
      %v1517 = vmul.f32 %v1516, %v1515
      %v1518 = vmul.f32 0.5, %v1517
      %v1519 = vsub.f32 1.5, %v1518
      %v1520 = vmul.f32 %v1515, %v1519
      %vm1521 = vweird.f32 %v1514
      %vm1522 = vweird.f32 %v1515
      %vm1523 = vmor %vm1521, %vm1522
      %v1524 = vsel %vm1523, %v1515, %v1520
      %v1525 = vmul.f32 %v1508, %v1524
      %v1527 = vperm.slane %v1495, 0
      %v1529 = vmul.f32 %v1525, %v1527
      %v1531 = vperm.slane %v1496, 0
      %v1533 = vadd.f32 %v1529, %v1531
      %v1534 = vld [vmem:[%s1080] sm:$0xf]
      %v1535 = vld [vmem:[%s1080 + $0x4] sm:$0xf]
      %v1536 = vld [vmem:[%s1080 + $0x8] sm:$0xf]
      %v1537 = vld [vmem:[%s1080 + $0xc] sm:$0xf]
      %v1538 = vld [vmem:[%s1083] sm:$0x1]
      %v1539 = vpack.c.bf16 %v1533, %v1533
      %v1541 = vperm.slane %v1538, 0
      %v1547 = vunpack.c.l.b16 %v1534
      %v1548 = vunpack.c.l.b16 %v1535
      %v1549 = vunpack.c.l.b16 %v1536
      %v1550 = vunpack.c.l.b16 %v1537
      %v1551 = vpack.c.b16 %v1548, %v1547
      %v1552 = vpack.c.b16 %v1550, %v1549
      %v1556 = vsel %vm1171, %v1539, 0
      %1558 = vmatpush.bf16.msra.mxu0 0
      %1559 = vmatpush.bf16.msra.mxu0 0
      %1560 = vmatpush.bf16.msra.mxu0 0
      %1561 = vmatpush.bf16.msra.mxu0 0
      %1562 = vmatpush.bf16.msra.mxu0 0
      %1563 = vmatpush.bf16.msra.mxu0 0
      %1564 = vmatpush.bf16.msra.mxu0 %v1552
      %1565 = vmatpush.bf16.msra.mxu0 %v1551
      %1566 = vmatmul.bf16.gmra.mxu0 %v1556
      %v1567 = vpop.f32.mrf.mxu0
      %v1568 = vadd.f32 %v1541, %v1567
      %v1569 = vpop.f32.mrf.mxu0
      %1570 = vdwg.mxu0
      %v1571 = vld [vmem:[%s1088] sm:$0xf]
      %v1572 = vld [vmem:[%s1088 + $0x4] sm:$0xf]
      %v1573 = vld [vmem:[%s1088 + $0x8] sm:$0xf]
      %v1574 = vld [vmem:[%s1088 + $0xc] sm:$0xf]
      %v1575 = vld [vmem:[%s1091] sm:$0x1]
      %v1576 = vpack.c.bf16 %v1147, %v1147
      %v1578 = vperm.slane %v1575, 0
      %v1584 = vunpack.c.l.b16 %v1571
      %v1585 = vunpack.c.l.b16 %v1572
      %v1586 = vunpack.c.l.b16 %v1573
      %v1587 = vunpack.c.l.b16 %v1574
      %v1588 = vpack.c.b16 %v1585, %v1584
      %v1589 = vpack.c.b16 %v1587, %v1586
      %v1593 = vsel %vm1171, %v1576, 0
      %1595 = vmatpush.bf16.msra.mxu0 0
      %1596 = vmatpush.bf16.msra.mxu0 0
      %1597 = vmatpush.bf16.msra.mxu0 0
      %1598 = vmatpush.bf16.msra.mxu0 0
      %1599 = vmatpush.bf16.msra.mxu0 0
      %1600 = vmatpush.bf16.msra.mxu0 0
      %1601 = vmatpush.bf16.msra.mxu0 %v1589
      %1602 = vmatpush.bf16.msra.mxu0 %v1588
      %1603 = vmatmul.bf16.gmra.mxu0 %v1593
      %v1604 = vpop.f32.mrf.mxu0
      %v1605 = vadd.f32 %v1578, %v1604
      %v1606 = vpop.f32.mrf.mxu0
      %1607 = vdwg.mxu0
      %v1608 = vld [vmem:[%s1096] sm:$0xf]
      %v1609 = vld [vmem:[%s1096 + $0x4] sm:$0xf]
      %v1610 = vld [vmem:[%s1096 + $0x8] sm:$0xf]
      %v1611 = vld [vmem:[%s1096 + $0xc] sm:$0xf]
      %v1612 = vld [vmem:[%s1099] sm:$0x1]
      %1614 = vrot.lane.b32.xlu0 %v1568, 120
      %v1615 = vpop.permute.xlu0 %1614
      %1617 = vrot.lane.b32.xlu0 %v1568, 112
      %v1618 = vpop.permute.xlu0 %1617
      %1620 = vrot.lane.b32.xlu0 %v1568, 104
      %v1621 = vpop.permute.xlu0 %1620
      %v1623 = vpack.c.bf16 %v1568, %v1568
      %v1624 = vpack.c.bf16 %v1615, %v1615
      %v1625 = vpack.c.bf16 %v1618, %v1618
      %v1626 = vpack.c.bf16 %v1621, %v1621
      %1628 = vrot.lane.b32.xlu0 %v1605, 120
      %v1629 = vpop.permute.xlu0 %1628
      %1631 = vrot.lane.b32.xlu0 %v1605, 112
      %v1632 = vpop.permute.xlu0 %1631
      %1634 = vrot.lane.b32.xlu0 %v1605, 104
      %v1635 = vpop.permute.xlu0 %1634
      %v1637 = vpack.c.bf16 %v1605, %v1605
      %v1638 = vpack.c.bf16 %v1629, %v1629
      %v1639 = vpack.c.bf16 %v1632, %v1632
      %v1640 = vpack.c.bf16 %v1635, %v1635
      %v1642 = vsel %vm1212, %v1623, 0
      %v1645 = vsel %vm1212, %v1637, 0
      %1647 = vmatpush.bf16.xpose.msra.mxu0 0
      %1648 = vmatpush.bf16.xpose.msra.mxu0 0
      %1649 = vmatpush.bf16.xpose.msra.mxu0 0
      %1650 = vmatpush.bf16.xpose.msra.mxu0 0
      %1651 = vmatpush.bf16.xpose.msra.mxu0 0
      %1652 = vmatpush.bf16.xpose.msra.mxu0 0
      %1653 = vmatpush.bf16.xpose.msra.mxu0 0
      %1654 = vmatpush.bf16.xpose.msra.mxu0 %v1645
      %1655 = vmatmul.bf16.gmra.mxu0 %v1642
      %v1656 = vpop.f32.mrf.mxu0
      %v1657 = vadd.f32 0.0, %v1656
      %v1658 = vpop.f32.mrf.mxu0
      %1659 = vdwg.mxu0
      %v1661 = vsel %vm1212, %v1624, 0
      %v1664 = vsel %vm1212, %v1638, 0
      %1666 = vmatpush.bf16.xpose.msra.mxu0 0
      %1667 = vmatpush.bf16.xpose.msra.mxu0 0
      %1668 = vmatpush.bf16.xpose.msra.mxu0 0
      %1669 = vmatpush.bf16.xpose.msra.mxu0 0
      %1670 = vmatpush.bf16.xpose.msra.mxu0 0
      %1671 = vmatpush.bf16.xpose.msra.mxu0 0
      %1672 = vmatpush.bf16.xpose.msra.mxu0 0
      %1673 = vmatpush.bf16.xpose.msra.mxu0 %v1664
      %1674 = vmatmul.bf16.gmra.mxu0 %v1661
      %v1675 = vpop.f32.mrf.mxu0
      %v1676 = vadd.f32 0.0, %v1675
      %v1677 = vpop.f32.mrf.mxu0
      %1678 = vdwg.mxu0
      %v1680 = vsel %vm1212, %v1625, 0
      %v1683 = vsel %vm1212, %v1639, 0
      %1685 = vmatpush.bf16.xpose.msra.mxu0 0
      %1686 = vmatpush.bf16.xpose.msra.mxu0 0
      %1687 = vmatpush.bf16.xpose.msra.mxu0 0
      %1688 = vmatpush.bf16.xpose.msra.mxu0 0
      %1689 = vmatpush.bf16.xpose.msra.mxu0 0
      %1690 = vmatpush.bf16.xpose.msra.mxu0 0
      %1691 = vmatpush.bf16.xpose.msra.mxu0 0
      %1692 = vmatpush.bf16.xpose.msra.mxu0 %v1683
      %1693 = vmatmul.bf16.gmra.mxu0 %v1680
      %v1694 = vpop.f32.mrf.mxu0
      %v1695 = vadd.f32 0.0, %v1694
      %v1696 = vpop.f32.mrf.mxu0
      %1697 = vdwg.mxu0
      %v1699 = vsel %vm1212, %v1626, 0
      %v1702 = vsel %vm1212, %v1640, 0
      %1704 = vmatpush.bf16.xpose.msra.mxu0 0
      %1705 = vmatpush.bf16.xpose.msra.mxu0 0
      %1706 = vmatpush.bf16.xpose.msra.mxu0 0
      %1707 = vmatpush.bf16.xpose.msra.mxu0 0
      %1708 = vmatpush.bf16.xpose.msra.mxu0 0
      %1709 = vmatpush.bf16.xpose.msra.mxu0 0
      %1710 = vmatpush.bf16.xpose.msra.mxu0 0
      %1711 = vmatpush.bf16.xpose.msra.mxu0 %v1702
      %1712 = vmatmul.bf16.gmra.mxu0 %v1699
      %v1713 = vpop.f32.mrf.mxu0
      %v1714 = vadd.f32 0.0, %v1713
      %v1715 = vpop.f32.mrf.mxu0
      %1716 = vdwg.mxu0
      %v1717 = vmul.f32 %v1657, 0.35355338
      %v1718 = vmul.f32 %v1676, 0.35355338
      %v1719 = vmul.f32 %v1695, 0.35355338
      %v1720 = vmul.f32 %v1714, 0.35355338
      %v1721 = vadd.f32 %v1717, %v1149
      %v1722 = vadd.f32 %v1718, %v1149
      %v1723 = vadd.f32 %v1719, %v1149
      %v1724 = vadd.f32 %v1720, %v1149
      %v1725 = vsel %vm1212, %v1721, -inf
      %1726 = vmax.xlane.f32.xlu0 %v1725
      %v1727 = vpop.xlane.xlu0 %1726
      %v1728 = vsel %vm1212, %v1722, -inf
      %1729 = vmax.xlane.f32.xlu0 %v1728
      %v1730 = vpop.xlane.xlu0 %1729
      %v1731 = vsel %vm1212, %v1723, -inf
      %1732 = vmax.xlane.f32.xlu0 %v1731
      %v1733 = vpop.xlane.xlu0 %1732
      %v1734 = vsel %vm1212, %v1724, -inf
      %1735 = vmax.xlane.f32.xlu0 %v1734
      %v1736 = vpop.xlane.xlu0 %1735
      %v1737 = vsub.f32 %v1721, %v1727
      %v1738 = vsub.f32 %v1722, %v1730
      %v1739 = vsub.f32 %v1723, %v1733
      %v1740 = vsub.f32 %v1724, %v1736
      %v1741 = vmul.f32 %v1737, 1.442695
      %v1742 = vpow.pop %v1741
      %v1743 = vmul.f32 %v1738, 1.442695
      %v1744 = vpow.pop %v1743
      %v1745 = vmul.f32 %v1739, 1.442695
      %v1746 = vpow.pop %v1745
      %v1747 = vmul.f32 %v1740, 1.442695
      %v1748 = vpow.pop %v1747
      %v1749 = vsel %vm1212, %v1742, 0.0
      %1750 = vadd.xlane.f32.xlu0 %v1749
      %v1751 = vpop.xlane.xlu0 %1750
      %v1752 = vsel %vm1212, %v1744, 0.0
      %1753 = vadd.xlane.f32.xlu0 %v1752
      %v1754 = vpop.xlane.xlu0 %1753
      %v1755 = vsel %vm1212, %v1746, 0.0
      %1756 = vadd.xlane.f32.xlu0 %v1755
      %v1757 = vpop.xlane.xlu0 %1756
      %v1758 = vsel %vm1212, %v1748, 0.0
      %1759 = vadd.xlane.f32.xlu0 %v1758
      %v1760 = vpop.xlane.xlu0 %1759
      %v1761 = vrcp.pop %v1751
      %v1762 = vrcp.pop %v1754
      %v1763 = vrcp.pop %v1757
      %v1764 = vrcp.pop %v1760
      %v1765 = vmul.f32 %v1742, %v1761
      %v1766 = vmul.f32 %v1744, %v1762
      %v1767 = vmul.f32 %v1746, %v1763
      %v1768 = vmul.f32 %v1748, %v1764
      %v1769 = vpack.c.bf16 %v1765, %v1765
      %v1770 = vpack.c.bf16 %v1766, %v1766
      %v1771 = vpack.c.bf16 %v1767, %v1767
      %v1772 = vpack.c.bf16 %v1768, %v1768
      %v1774 = vunpack.c.l.b16 %v1637
      %v1775 = vpack.c.b16 %v1774, %v1774
      %1776 = vrot.lane.b32.xlu0 %v1775, 96
      %v1777 = vpop.permute.xlu0 %1776
      %v1779 = vsel %vm1212, %v1769, 0
      %v1782 = vsel %vm1365, %v1777, 0
      %1784 = vmatpush.bf16.msra.mxu0 0
      %1785 = vmatpush.bf16.msra.mxu0 0
      %1786 = vmatpush.bf16.msra.mxu0 0
      %1787 = vmatpush.bf16.msra.mxu0 0
      %1788 = vmatpush.bf16.msra.mxu0 0
      %1789 = vmatpush.bf16.msra.mxu0 0
      %1790 = vmatpush.bf16.msra.mxu0 0
      %1791 = vmatpush.bf16.msra.mxu0 %v1782
      %1792 = vmatmul.bf16.gmra.mxu0 %v1779
      %v1793 = vpop.f32.mrf.mxu0
      %v1794 = vadd.f32 0.0, %v1793
      %v1795 = vpop.f32.mrf.mxu0
      %1796 = vdwg.mxu0
      %v1798 = vunpack.c.l.b16 %v1638
      %v1799 = vpack.c.b16 %v1798, %v1798
      %1800 = vrot.lane.b32.xlu0 %v1799, 96
      %v1801 = vpop.permute.xlu0 %1800
      %v1803 = vsel %vm1212, %v1770, 0
      %v1806 = vsel %vm1365, %v1801, 0
      %1808 = vmatpush.bf16.msra.mxu0 0
      %1809 = vmatpush.bf16.msra.mxu0 0
      %1810 = vmatpush.bf16.msra.mxu0 0
      %1811 = vmatpush.bf16.msra.mxu0 0
      %1812 = vmatpush.bf16.msra.mxu0 0
      %1813 = vmatpush.bf16.msra.mxu0 0
      %1814 = vmatpush.bf16.msra.mxu0 0
      %1815 = vmatpush.bf16.msra.mxu0 %v1806
      %1816 = vmatmul.bf16.gmra.mxu0 %v1803
      %v1817 = vpop.f32.mrf.mxu0
      %v1818 = vadd.f32 0.0, %v1817
      %v1819 = vpop.f32.mrf.mxu0
      %1820 = vdwg.mxu0
      %v1822 = vunpack.c.l.b16 %v1639
      %v1823 = vpack.c.b16 %v1822, %v1822
      %1824 = vrot.lane.b32.xlu0 %v1823, 96
      %v1825 = vpop.permute.xlu0 %1824
      %v1827 = vsel %vm1212, %v1771, 0
      %v1830 = vsel %vm1365, %v1825, 0
      %1832 = vmatpush.bf16.msra.mxu0 0
      %1833 = vmatpush.bf16.msra.mxu0 0
      %1834 = vmatpush.bf16.msra.mxu0 0
      %1835 = vmatpush.bf16.msra.mxu0 0
      %1836 = vmatpush.bf16.msra.mxu0 0
      %1837 = vmatpush.bf16.msra.mxu0 0
      %1838 = vmatpush.bf16.msra.mxu0 0
      %1839 = vmatpush.bf16.msra.mxu0 %v1830
      %1840 = vmatmul.bf16.gmra.mxu0 %v1827
      %v1841 = vpop.f32.mrf.mxu0
      %v1842 = vadd.f32 0.0, %v1841
      %v1843 = vpop.f32.mrf.mxu0
      %1844 = vdwg.mxu0
      %v1846 = vunpack.c.l.b16 %v1640
      %v1847 = vpack.c.b16 %v1846, %v1846
      %1848 = vrot.lane.b32.xlu0 %v1847, 96
      %v1849 = vpop.permute.xlu0 %1848
      %v1851 = vsel %vm1212, %v1772, 0
      %v1854 = vsel %vm1365, %v1849, 0
      %1856 = vmatpush.bf16.msra.mxu0 0
      %1857 = vmatpush.bf16.msra.mxu0 0
      %1858 = vmatpush.bf16.msra.mxu0 0
      %1859 = vmatpush.bf16.msra.mxu0 0
      %1860 = vmatpush.bf16.msra.mxu0 0
      %1861 = vmatpush.bf16.msra.mxu0 0
      %1862 = vmatpush.bf16.msra.mxu0 0
      %1863 = vmatpush.bf16.msra.mxu0 %v1854
      %1864 = vmatmul.bf16.gmra.mxu0 %v1851
      %v1865 = vpop.f32.mrf.mxu0
      %v1866 = vadd.f32 0.0, %v1865
      %v1867 = vpop.f32.mrf.mxu0
      %1868 = vdwg.mxu0
      %1870 = vrot.lane.b32.xlu0 %v1818, 8
      %v1871 = vpop.permute.xlu0 %1870
      %1874 = vrot.lane.b32.xlu0 %v1842, 16
      %v1875 = vpop.permute.xlu0 %1874
      %1878 = vrot.lane.b32.xlu0 %v1866, 24
      %v1879 = vpop.permute.xlu0 %1878
      %v1881 = vsel %vm1212, %v1794, %v1871
      %v1882 = vsel %vm1458, %v1881, %v1875
      %v1883 = vsel %vm1460, %v1882, %v1879
      %v1884 = vpack.c.bf16 %v1883, %v1883
      %v1886 = vperm.slane %v1612, 0
      %v1892 = vunpack.c.l.b16 %v1608
      %v1893 = vunpack.c.l.b16 %v1609
      %v1894 = vunpack.c.l.b16 %v1610
      %v1895 = vunpack.c.l.b16 %v1611
      %v1896 = vpack.c.b16 %v1893, %v1892
      %v1897 = vpack.c.b16 %v1895, %v1894
      %v1901 = vsel %vm1171, %v1884, 0
      %1903 = vmatpush.bf16.msra.mxu0 0
      %1904 = vmatpush.bf16.msra.mxu0 0
      %1905 = vmatpush.bf16.msra.mxu0 0
      %1906 = vmatpush.bf16.msra.mxu0 0
      %1907 = vmatpush.bf16.msra.mxu0 0
      %1908 = vmatpush.bf16.msra.mxu0 0
      %1909 = vmatpush.bf16.msra.mxu0 %v1897
      %1910 = vmatpush.bf16.msra.mxu0 %v1896
      %1911 = vmatmul.bf16.gmra.mxu0 %v1901
      %v1912 = vpop.f32.mrf.mxu0
      %v1913 = vadd.f32 %v1886, %v1912
      %v1914 = vpop.f32.mrf.mxu0
      %1915 = vdwg.mxu0
      %v1916 = vadd.f32 %v1533, %v1913
      %v1917 = vld [vmem:[%s1108] sm:$0x1]
      %v1918 = vld [vmem:[%s1111] sm:$0x1]
      %v1919 = vsel %vm1171, %v1916, 0.0
      %1920 = vadd.xlane.f32.xlu0 %v1919
      %v1921 = vpop.xlane.xlu0 %1920
      %v1922 = vmul.f32 %v1921, %v1506
      %v1923 = vsub.f32 %v1916, %v1922
      %v1924 = vmul.f32 %v1923, %v1923
      %v1925 = vsel %vm1171, %v1924, 0.0
      %1926 = vadd.xlane.f32.xlu0 %v1925
      %v1927 = vpop.xlane.xlu0 %1926
      %v1928 = vmul.f32 %v1927, %v1506
      %v1929 = vadd.f32 %v1928, 1e-05
      %v1930 = vrsqrt.pop %v1929
      %v1931 = vmul.f32 %v1930, %v1929
      %v1932 = vmul.f32 %v1931, %v1930
      %v1933 = vmul.f32 0.5, %v1932
      %v1934 = vsub.f32 1.5, %v1933
      %v1935 = vmul.f32 %v1930, %v1934
      %vm1936 = vweird.f32 %v1929
      %vm1937 = vweird.f32 %v1930
      %vm1938 = vmor %vm1936, %vm1937
      %v1939 = vsel %vm1938, %v1930, %v1935
      %v1940 = vmul.f32 %v1923, %v1939
      %v1942 = vperm.slane %v1917, 0
      %v1944 = vmul.f32 %v1940, %v1942
      %v1946 = vperm.slane %v1918, 0
      %v1948 = vadd.f32 %v1944, %v1946
      %v1949 = vld [vmem:[%s1122] sm:$0xf]
      %v1950 = vld [vmem:[%s1122 + $0x4] sm:$0xf]
      %v1951 = vld [vmem:[%s1122 + $0x8] sm:$0xf]
      %v1952 = vld [vmem:[%s1122 + $0xc] sm:$0xf]
      %v1953 = vld [vmem:[%s1125] sm:$0x1]
      %v1954 = vpack.c.bf16 %v1948, %v1948
      %v1956 = vperm.slane %v1953, 0
      %v1962 = vunpack.c.l.b16 %v1949
      %v1963 = vunpack.c.l.b16 %v1950
      %v1964 = vunpack.c.l.b16 %v1951
      %v1965 = vunpack.c.l.b16 %v1952
      %v1966 = vpack.c.b16 %v1963, %v1962
      %v1967 = vpack.c.b16 %v1965, %v1964
      %v1971 = vsel %vm1171, %v1954, 0
      %1973 = vmatpush.bf16.msra.mxu0 0
      %1974 = vmatpush.bf16.msra.mxu0 0
      %1975 = vmatpush.bf16.msra.mxu0 0
      %1976 = vmatpush.bf16.msra.mxu0 0
      %1977 = vmatpush.bf16.msra.mxu0 0
      %1978 = vmatpush.bf16.msra.mxu0 0
      %1979 = vmatpush.bf16.msra.mxu0 %v1967
      %1980 = vmatpush.bf16.msra.mxu0 %v1966
      %1981 = vmatmul.bf16.gmra.mxu0 %v1971
      %v1982 = vpop.f32.mrf.mxu0
      %v1983 = vadd.f32 %v1956, %v1982
      %v1984 = vpop.f32.mrf.mxu0
      %1985 = vdwg.mxu0
      %v1986 = vmax.f32 %v1983, 0.0
      %v1987 = vld [vmem:[%s1130] sm:$0xf]
      %v1988 = vld [vmem:[%s1130 + $0x4] sm:$0xf]
      %v1989 = vld [vmem:[%s1130 + $0x8] sm:$0xf]
      %v1990 = vld [vmem:[%s1130 + $0xc] sm:$0xf]
      %v1991 = vld [vmem:[%s1130 + $0x10] sm:$0xf]
      %v1992 = vld [vmem:[%s1130 + $0x14] sm:$0xf]
      %v1993 = vld [vmem:[%s1130 + $0x18] sm:$0xf]
      %v1994 = vld [vmem:[%s1130 + $0x1c] sm:$0xf]
      %v1995 = vld [vmem:[%s1133] sm:$0x1]
      %v1996 = vpack.c.bf16 %v1986, %v1986
      %v1998 = vperm.slane %v1995, 0
      %v2008 = vunpack.c.l.b16 %v1987
      %v2009 = vunpack.c.l.b16 %v1988
      %v2010 = vunpack.c.l.b16 %v1989
      %v2011 = vunpack.c.l.b16 %v1990
      %v2012 = vunpack.c.l.b16 %v1991
      %v2013 = vunpack.c.l.b16 %v1992
      %v2014 = vunpack.c.l.b16 %v1993
      %v2015 = vunpack.c.l.b16 %v1994
      %v2016 = vpack.c.b16 %v2009, %v2008
      %v2017 = vpack.c.b16 %v2011, %v2010
      %v2018 = vpack.c.b16 %v2013, %v2012
      %v2019 = vpack.c.b16 %v2015, %v2014
      %vm2024 = vcmask 523264
      %v2026 = vsel %vm2024, %v1996, 0
      %2028 = vmatpush.bf16.msra.mxu0 0
      %2029 = vmatpush.bf16.msra.mxu0 0
      %2030 = vmatpush.bf16.msra.mxu0 0
      %2031 = vmatpush.bf16.msra.mxu0 0
      %2032 = vmatpush.bf16.msra.mxu0 %v2019
      %2033 = vmatpush.bf16.msra.mxu0 %v2018
      %2034 = vmatpush.bf16.msra.mxu0 %v2017
      %2035 = vmatpush.bf16.msra.mxu0 %v2016
      %2036 = vmatmul.bf16.gmra.mxu0 %v2026
      %v2037 = vpop.f32.mrf.mxu0
      %v2038 = vadd.f32 %v1998, %v2037
      %v2039 = vpop.f32.mrf.mxu0
      %2040 = vdwg.mxu0
      %v2041 = vadd.f32 %v1948, %v2038
      %v2042 = vld [vmem:[%s1114] sm:$0x1]
      %v2043 = vld [vmem:[%s1117] sm:$0x1]
      %v2044 = vsel %vm1171, %v2041, 0.0
      %2045 = vadd.xlane.f32.xlu0 %v2044
      %v2046 = vpop.xlane.xlu0 %2045
      %v2047 = vmul.f32 %v2046, %v1506
      %v2048 = vsub.f32 %v2041, %v2047
      %v2049 = vmul.f32 %v2048, %v2048
      %v2050 = vsel %vm1171, %v2049, 0.0
      %2051 = vadd.xlane.f32.xlu0 %v2050
      %v2052 = vpop.xlane.xlu0 %2051
      %v2053 = vmul.f32 %v2052, %v1506
      %v2054 = vadd.f32 %v2053, 1e-05
      %v2055 = vrsqrt.pop %v2054
      %v2056 = vmul.f32 %v2055, %v2054
      %v2057 = vmul.f32 %v2056, %v2055
      %v2058 = vmul.f32 0.5, %v2057
      %v2059 = vsub.f32 1.5, %v2058
      %v2060 = vmul.f32 %v2055, %v2059
      %vm2061 = vweird.f32 %v2054
      %vm2062 = vweird.f32 %v2055
      %vm2063 = vmor %vm2061, %vm2062
      %v2064 = vsel %vm2063, %v2055, %v2060
      %v2065 = vmul.f32 %v2048, %v2064
      %v2067 = vperm.slane %v2042, 0
      %v2069 = vmul.f32 %v2065, %v2067
      %v2071 = vperm.slane %v2043, 0
      %v2073 = vadd.f32 %v2069, %v2071
      %2074 = vst.msk [vmem:[#allocation2] sm:$0xff] %vm1171, %v2073
      %p2075 = scmp.eq.s32.totalorder %s42, 1
      // Predicated region
      $region129: #{decoder_forward.1} parent=123 // pred_check
        %p2076 = pneg %p2075
      $region130: #{decoder_forward.1} parent=123 // pred_check_branch
        %2078 = sbr.rel (%p2076) target = $region132
      $region131: #{decoder_forward.1} parent=123 // pred_region
        %v2079 = vld [vmem:[%s24] sm:$0xf]
        %v2080 = vld [vmem:[%s24 + $0x4] sm:$0xf]
        %v2081 = vld [vmem:[%s24 + $0x8] sm:$0xf]
        %v2082 = vld [vmem:[%s24 + $0xc] sm:$0xf]
        %v2083 = vld [vmem:[%s25] sm:$0x1]
        %v2084 = vpack.c.bf16 %v2073, %v2073
        %v2086 = vperm.slane %v2083, 0
        %v2092 = vunpack.c.l.b16 %v2079
        %v2093 = vunpack.c.l.b16 %v2080
        %v2094 = vunpack.c.l.b16 %v2081
        %v2095 = vunpack.c.l.b16 %v2082
        %v2096 = vpack.c.b16 %v2093, %v2092
        %v2097 = vpack.c.b16 %v2095, %v2094
        %v2101 = vsel %vm1171, %v2084, 0
        %2103 = vmatpush.bf16.msra.mxu0 0
        %2104 = vmatpush.bf16.msra.mxu0 0
        %2105 = vmatpush.bf16.msra.mxu0 0
        %2106 = vmatpush.bf16.msra.mxu0 0
        %2107 = vmatpush.bf16.msra.mxu0 0
        %2108 = vmatpush.bf16.msra.mxu0 0
        %2109 = vmatpush.bf16.msra.mxu0 %v2097
        %2110 = vmatpush.bf16.msra.mxu0 %v2096
        %2111 = vmatmul.bf16.gmra.mxu0 %v2101
        %v2112 = vpop.f32.mrf.mxu0
        %v2113 = vadd.f32 %v2086, %v2112
        %v2114 = vpop.f32.mrf.mxu0
        %2115 = vdwg.mxu0
        %2116 = vmax.xlane.f32.xlu0 %v2113
        %v2117 = vpop.xlane.xlu0 %2116
        %v2118 = vsub.f32 %v2113, %v2117
        %v2119 = vmul.f32 %v2118, 1.442695
        %v2120 = vpow.pop %v2119
        %2121 = vadd.xlane.f32.xlu0 %v2120
        %v2122 = vpop.xlane.xlu0 %2121
        %v2123 = vlog2.pop %v2122
        %v2124 = vmul.f32 %v2123, 0.6931472
        %v2125 = vsub.f32 %v2118, %v2124
        %2126 = vst [vmem:[%s1137] sm:$0xff] %v2125
      $region132: #{decoder_forward.1} parent=123 // pred_fallthru
        _
      %p2127 = scmp.lt.s32.totalorder %s41, 1
      %s2128 = scalar_select %p2127, %s41, 1
      %s2129 = smul.addr %s2128, 8
      %s2130 = scalar_lea.vmem %s26, %s2129
      // Predicated region
      $region133: #{decoder_forward.1} parent=123 // pred_check
        %p2131 = pneg %p723
      $region134: #{decoder_forward.1} parent=123 // pred_check_branch
        %2133 = sbr.rel (%p2131) target = $region136
      $region135: #{decoder_forward.1} parent=123 // pred_region
        _
      $region136: #{decoder_forward.1} parent=123 // pred_fallthru
        _
    $region124: #{decoder_forward.1} parent=5 // pred_fallthru
      _
    %p2134 = scmp.le.s32.totalorder 2, %s32
    // Predicated region
    $region137: #{decoder_forward.1} parent=5 // pred_check
      %p2135 = pneg %p2134
    $region138: #{decoder_forward.1} parent=5 // pred_check_branch
      %2137 = sbr.rel (%p2135) target = $region140
    $region139: #{decoder_forward.1} parent=5 // pred_region
      %s2138 = ssub.s32 %s32, 2
      // Predicated region
      $region141: #{decoder_forward.1} parent=139 // pred_check
        %p2139 = pneg %p729
      $region142: #{decoder_forward.1} parent=139 // pred_check_branch
        %2141 = sbr.rel (%p2139) target = $region144
      $region143: #{decoder_forward.1} parent=139 // pred_region
        %p2142 = scmp.lt.s32.totalorder %s43, 1
        %s2143 = scalar_select %p2142, %s43, 1
        %s2144 = smul.addr %s2143, 8
        %s2145 = scalar_lea.vmem %s26, %s2144
      $region144: #{decoder_forward.1} parent=139 // pred_fallthru
        _
    $region140: #{decoder_forward.1} parent=5 // pred_fallthru
      _
  $region6: #{decoder_forward.1} parent=0 // loop_footer
    %s36 = sadd.s32 1, %s32
  $region7: #{decoder_forward.1} parent=0 // loop_footer_branch
    %31 = sbr.rel target = $region3
  $region8: #{decoder_forward.1} parent=0 // loop_exit
    _

</llo_original>
